<compile_context>
chip_gen: v7x
topology: tpu7x:2x2x1
jax: 0.10.0
libtpu: 0.0.40
codegen_flags: <defaults>
</compile_context>

<pallas_src>
import functools
import numpy as np

import jax
import jax.numpy as jnp
from jax import lax
from jax.experimental import pallas as pl
from jax.experimental.pallas import tpu as pltpu


# ---------------------------------------------------------------------------
# Kernels
# ---------------------------------------------------------------------------
def _qkv_proj_kernel(w_ref, x_ref, q_ref, k_ref, v_ref, *, hidden):
    """Fused to_qkv 1x1x1 conv: (3*hidden, C) @ (C, TILE_N) -> q/k/v tiles."""
    y = jnp.dot(w_ref[...], x_ref[0], preferred_element_type=jnp.float32)
    q_ref[0] = y[:hidden, :].astype(q_ref.dtype)          # already scaled
    k_ref[0] = y[hidden:2 * hidden, :].astype(k_ref.dtype)
    v_ref[0] = y[2 * hidden:, :].astype(v_ref.dtype)


def _flash_attn_kernel(q_ref, k_ref, v_ref, wo_ref, bo_ref, o_ref,
                       m_sc, l_sc, acc_sc):
    """Per (batch, q-tile, head): stream k/v tiles with online softmax, then
    fuse the to_out projection (+bias) and the cross-head sum into the output
    block (dim, TILE_Q)."""
    h = pl.program_id(2)
    kv = pl.program_id(3)

    @pl.when(kv == 0)
    def _init():
        m_sc[...] = jnp.full(m_sc.shape, -jnp.inf, m_sc.dtype)
        l_sc[...] = jnp.zeros(l_sc.shape, l_sc.dtype)
        acc_sc[...] = jnp.zeros(acc_sc.shape, acc_sc.dtype)

    qT = q_ref[0]                      # (Dh, TQ) bf16, pre-scaled
    kT = k_ref[0]                      # (Dh, TK) bf16
    vT = v_ref[0]                      # (Dh, TK) bf16

    # sim[i, j] = sum_d q[d, i] * k[d, j]   (matches einsum 'bhdi,bhdj->bhij')
    s = lax.dot_general(qT, kT, (((0,), (0,)), ((), ())),
                        preferred_element_type=jnp.float32)       # (TQ, TK)

    m_prev = m_sc[...]                                            # (TQ, 1)
    m_new = jnp.maximum(m_prev, jnp.max(s, axis=1, keepdims=True))
    alpha = jnp.exp(m_prev - m_new)
    p = jnp.exp(s - m_new)                                        # (TQ, TK)
    l_sc[...] = alpha * l_sc[...] + jnp.sum(p, axis=1, keepdims=True)
    # out_update[i, d] = sum_j p[i, j] * v[d, j]
    pv = lax.dot_general(p.astype(jnp.bfloat16), vT, (((1,), (1,)), ((), ())),
                         preferred_element_type=jnp.float32)      # (TQ, Dh)
    acc_sc[...] = alpha * acc_sc[...] + pv
    m_sc[...] = m_new

    @pl.when(kv == pl.num_programs(3) - 1)
    def _finalize():
        o_h = acc_sc[...] * pl.reciprocal(l_sc[...], approx=True)  # (TQ, Dh)
        # Fused to_out projection, emitted transposed -> lane-dense (dim, TQ).
        yT = lax.dot_general(wo_ref[0], o_h.astype(jnp.bfloat16),
                             (((0,), (1,)), ((), ())),
                             preferred_element_type=jnp.float32)   # (dim, TQ)

        @pl.when(h == 0)
        def _():
            o_ref[0] = (yT + bo_ref[...]).astype(o_ref.dtype)

        @pl.when(h > 0)
        def _():
            o_ref[0] = o_ref[0] + yT.astype(o_ref.dtype)


# ---------------------------------------------------------------------------
# Wrapper
# ---------------------------------------------------------------------------
def _pick_tile(n, target):
    """Largest tile <= target dividing n (multiples of 128 for lane density)."""
    if n <= target:
        return n
    t = max(128, (target // 128) * 128)
    while t > 128 and n % t != 0:
        t -= 128
    if n % t != 0:
        raise ValueError(f"spatial size {n} has no 128-multiple tile <= {target}")
    return t


def attention_forward(x, params, *, heads=4, dim_head=32,
                      tile_n=512, tile_q=256, tile_k=256):
    """x: (B, dim, D, H, W) f32 NCDHW. Returns (B, dim, D, H, W) f32."""
    B, C = x.shape[0], x.shape[1]
    spatial = x.shape[2:]
    N = int(np.prod(spatial))
    hidden = heads * dim_head
    scale = dim_head ** (-0.5)

    tn = _pick_tile(N, tile_n)
    tq = _pick_tile(N, tile_q)
    tk = _pick_tile(N, tile_k)

    # channels-major, spatial flattened: pure reshape of NCDHW (no transpose)
    x_cn = x.reshape(B, C, N).astype(jnp.bfloat16)

    # Fold the q scaling into the q rows of the projection weight.
    w_qkv = params['w_qkv'].reshape(3 * hidden, C).astype(jnp.float32)
    w_qkv = jnp.concatenate([w_qkv[:hidden] * scale, w_qkv[hidden:]], axis=0)
    w_qkv = w_qkv.astype(jnp.bfloat16)

    vmem_cap = 32 * 1024 * 1024  # safe on v5e/v6e/v7x; actual use is far lower

    q, k, v = pl.pallas_call(
        functools.partial(_qkv_proj_kernel, hidden=hidden),
        out_shape=(jax.ShapeDtypeStruct((B, hidden, N), jnp.bfloat16),
                   jax.ShapeDtypeStruct((B, hidden, N), jnp.bfloat16),
                   jax.ShapeDtypeStruct((B, hidden, N), jnp.bfloat16)),
        grid=(B, N // tn),
        in_specs=[pl.BlockSpec((3 * hidden, C), lambda b, n: (0, 0)),
                  pl.BlockSpec((1, C, tn), lambda b, n: (b, 0, n))],
        out_specs=(pl.BlockSpec((1, hidden, tn), lambda b, n: (b, 0, n)),
                   pl.BlockSpec((1, hidden, tn), lambda b, n: (b, 0, n)),
                   pl.BlockSpec((1, hidden, tn), lambda b, n: (b, 0, n))),
        compiler_params=pltpu.CompilerParams(
            dimension_semantics=("parallel", "parallel"),
            vmem_limit_bytes=vmem_cap),
    )(w_qkv, x_cn)

    # Per-head to_out weights: wo_h[h, d, o] = W_out[o, h*Dh + d]
    w_out = params['w_out'].reshape(C, hidden).astype(jnp.float32)
    wo_h = w_out.T.reshape(heads, dim_head, C).astype(jnp.bfloat16)
    bo = params['b_out'].reshape(C, 1).astype(jnp.float32)

    out = pl.pallas_call(
        _flash_attn_kernel,
        out_shape=jax.ShapeDtypeStruct((B, C, N), jnp.float32),
        grid=(B, N // tq, heads, N // tk),
        in_specs=[
            pl.BlockSpec((1, dim_head, tq), lambda b, qi, h, kv: (b, h, qi)),
            pl.BlockSpec((1, dim_head, tk), lambda b, qi, h, kv: (b, h, kv)),
            pl.BlockSpec((1, dim_head, tk), lambda b, qi, h, kv: (b, h, kv)),
            pl.BlockSpec((1, dim_head, C), lambda b, qi, h, kv: (h, 0, 0)),
            pl.BlockSpec((C, 1), lambda b, qi, h, kv: (0, 0)),
        ],
        out_specs=pl.BlockSpec((1, C, tq), lambda b, qi, h, kv: (b, 0, qi)),
        scratch_shapes=[pltpu.VMEM((tq, 1), jnp.float32),
                        pltpu.VMEM((tq, 1), jnp.float32),
                        pltpu.VMEM((tq, dim_head), jnp.float32)],
        compiler_params=pltpu.CompilerParams(
            dimension_semantics=("parallel", "parallel", "arbitrary", "arbitrary"),
            vmem_limit_bytes=vmem_cap),
    )(q, k, v, wo_h, bo)

    return out.reshape(B, C, *spatial)


# ---------------------------------------------------------------------------
# Pure-JAX reference (matches PyTorch forward semantics, f32 throughout)
# ---------------------------------------------------------------------------
def ref_forward(x, params, *, heads=4, dim_head=32):
    B, C = x.shape[0], x.shape[1]
    spatial = x.shape[2:]
    N = int(np.prod(spatial))
    hidden = heads * dim_head
    scale = dim_head ** (-0.5)

    w_qkv = params['w_qkv'].reshape(3 * hidden, C)
    xf = x.reshape(B, C, N)
    qkv = jnp.einsum('oc,bcn->bon', w_qkv, xf)
    q, k, v = jnp.split(qkv, 3, axis=1)
    q = q.reshape(B, heads, dim_head, N) * scale
    k = k.reshape(B, heads, dim_head, N)
    v = v.reshape(B, heads, dim_head, N)
    sim = jnp.einsum('bhdi,bhdj->bhij', q, k)
    attn = jax.nn.softmax(sim, axis=-1)
    out = jnp.einsum('bhij,bhdj->bhid', attn, v)
    out = out.transpose(0, 1, 3, 2).reshape(B, hidden, N)   # b (h d) n
    w_out = params['w_out'].reshape(C, hidden)
    y = jnp.einsum('oc,bcn->bon', w_out, out) + params['b_out'][None, :, None]
    return y.reshape(B, C, *spatial)


# ---------------------------------------------------------------------------
if __name__ == "__main__":
    B, dim, heads, dim_head = 2, 8, 4, 32
    D1 = D2 = D3 = 8                      # N = 512 tokens
    hidden = heads * dim_head

    key = jax.random.PRNGKey(0)
    k1, k2, k3, k4 = jax.random.split(key, 4)
    params = {
        'w_qkv': 0.2 * jax.random.normal(k1, (3 * hidden, dim, 1, 1, 1), jnp.float32),
        'w_out': 0.1 * jax.random.normal(k2, (dim, hidden, 1, 1, 1), jnp.float32),
        'b_out': 0.1 * jax.random.normal(k3, (dim,), jnp.float32),
    }
    x = jax.random.normal(k4, (B, dim, D1, D2, D3), jnp.float32)

    out = attention_forward(x, params, heads=heads, dim_head=dim_head)
    out = jax.block_until_ready(out)
    assert out.shape == (B, dim, D1, D2, D3)

    ref = ref_forward(x, params, heads=heads, dim_head=dim_head)
    np.testing.assert_allclose(np.asarray(out), np.asarray(ref),
                               rtol=2e-2, atol=2e-2)

    print("KERNEL_OK")
</pallas_src>

<mosaic_0001>
module attributes {stable_mosaic.version = 11 : i64} {
  func.func @_qkv_proj_kernel(%arg0: i32, %arg1: i32, %arg2: memref<384x8xbf16, #tpu.memory_space<vmem>>, %arg3: memref<1x8x512xbf16, #tpu.memory_space<vmem>>, %arg4: memref<1x128x512xbf16, #tpu.memory_space<vmem>>, %arg5: memref<1x128x512xbf16, #tpu.memory_space<vmem>>, %arg6: memref<1x128x512xbf16, #tpu.memory_space<vmem>>) attributes {dimension_semantics = [#tpu.dimension_semantics<parallel>, #tpu.dimension_semantics<parallel>], iteration_bounds = array<i64: 2, 1>, scalar_prefetch = 0 : i64, scratch_operands = 0 : i64, tpu.core_type = #tpu.core_type<tc>, window_params = [{pipeline_mode = #tpu.pipeline_mode<synchronous>, transform_indices = @transform_0, window_bounds = array<i64: 384, 8>}, {transform_indices = @transform_1, window_bounds = array<i64: 1, 8, 512>}, {transform_indices = @transform_2, window_bounds = array<i64: 1, 128, 512>}, {transform_indices = @transform_3, window_bounds = array<i64: 1, 128, 512>}, {transform_indices = @transform_4, window_bounds = array<i64: 1, 128, 512>}]} {
    %c0 = arith.constant 0 : index
    %c0_0 = arith.constant 0 : index
    %0 = vector.load %arg2[%c0, %c0_0] : memref<384x8xbf16, #tpu.memory_space<vmem>>, vector<384x8xbf16>
    %c0_1 = arith.constant 0 : index
    %c0_2 = arith.constant 0 : index
    %c0_3 = arith.constant 0 : index
    %1 = vector.load %arg3[%c0_1, %c0_2, %c0_3] : memref<1x8x512xbf16, #tpu.memory_space<vmem>>, vector<1x8x512xbf16>
    %2 = vector.shape_cast %1 : vector<1x8x512xbf16> to vector<8x512xbf16>
    %cst = arith.constant dense<0.000000e+00> : vector<384x512xf32>
    %3 = tpu.matmul %0, %2, %cst {dimension_numbers = #tpu.dot_dimension_numbers<[1], [0], [0], [1], [0, 0, 1, 1], [], []>} : vector<384x8xbf16>, vector<8x512xbf16>, vector<384x512xf32> -> vector<384x512xf32>
    %4 = vector.extract_strided_slice %3 {offsets = [0, 0], sizes = [128, 512], strides = [1, 1]} : vector<384x512xf32> to vector<128x512xf32>
    %5 = arith.truncf %4 : vector<128x512xf32> to vector<128x512xbf16>
    %c0_4 = arith.constant 0 : index
    %c0_5 = arith.constant 0 : index
    %c0_6 = arith.constant 0 : index
    %6 = vector.load %arg4[%c0_4, %c0_5, %c0_6] : memref<1x128x512xbf16, #tpu.memory_space<vmem>>, vector<1x128x512xbf16>
    %7 = vector.shape_cast %6 : vector<1x128x512xbf16> to vector<128x512xbf16>
    %8 = vector.shape_cast %5 : vector<128x512xbf16> to vector<1x128x512xbf16>
    tpu.vector_store %arg4[%c0_4, %c0_5, %c0_6], %8 {strides = array<i32>} : memref<1x128x512xbf16, #tpu.memory_space<vmem>>, vector<1x128x512xbf16>,
    %9 = vector.extract_strided_slice %3 {offsets = [128, 0], sizes = [128, 512], strides = [1, 1]} : vector<384x512xf32> to vector<128x512xf32>
    %10 = arith.truncf %9 : vector<128x512xf32> to vector<128x512xbf16>
    %c0_7 = arith.constant 0 : index
    %c0_8 = arith.constant 0 : index
    %c0_9 = arith.constant 0 : index
    %11 = vector.load %arg5[%c0_7, %c0_8, %c0_9] : memref<1x128x512xbf16, #tpu.memory_space<vmem>>, vector<1x128x512xbf16>
    %12 = vector.shape_cast %11 : vector<1x128x512xbf16> to vector<128x512xbf16>
    %13 = vector.shape_cast %10 : vector<128x512xbf16> to vector<1x128x512xbf16>
    tpu.vector_store %arg5[%c0_7, %c0_8, %c0_9], %13 {strides = array<i32>} : memref<1x128x512xbf16, #tpu.memory_space<vmem>>, vector<1x128x512xbf16>,
    %14 = vector.extract_strided_slice %3 {offsets = [256, 0], sizes = [128, 512], strides = [1, 1]} : vector<384x512xf32> to vector<128x512xf32>
    %15 = arith.truncf %14 : vector<128x512xf32> to vector<128x512xbf16>
    %c0_10 = arith.constant 0 : index
    %c0_11 = arith.constant 0 : index
    %c0_12 = arith.constant 0 : index
    %16 = vector.load %arg6[%c0_10, %c0_11, %c0_12] : memref<1x128x512xbf16, #tpu.memory_space<vmem>>, vector<1x128x512xbf16>
    %17 = vector.shape_cast %16 : vector<1x128x512xbf16> to vector<128x512xbf16>
    %18 = vector.shape_cast %15 : vector<128x512xbf16> to vector<1x128x512xbf16>
    tpu.vector_store %arg6[%c0_10, %c0_11, %c0_12], %18 {strides = array<i32>} : memref<1x128x512xbf16, #tpu.memory_space<vmem>>, vector<1x128x512xbf16>,
    return
  }
  func.func @transform_0(%arg0: i32, %arg1: i32) -> (i32, i32) {
    %c0_i32 = arith.constant 0 : i32
    %c0_i32_0 = arith.constant 0 : i32
    %c0_i32_1 = arith.constant 0 : i32
    return %c0_i32, %c0_i32_0 : i32, i32
  }
  func.func @transform_1(%arg0: i32, %arg1: i32) -> (i32, i32, i32) {
    %c0_i32 = arith.constant 0 : i32
    %c0_i32_0 = arith.constant 0 : i32
    return %arg0, %c0_i32, %arg1 : i32, i32, i32
  }
  func.func @transform_2(%arg0: i32, %arg1: i32) -> (i32, i32, i32) {
    %c0_i32 = arith.constant 0 : i32
    %c0_i32_0 = arith.constant 0 : i32
    return %arg0, %c0_i32, %arg1 : i32, i32, i32
  }
  func.func @transform_3(%arg0: i32, %arg1: i32) -> (i32, i32, i32) {
    %c0_i32 = arith.constant 0 : i32
    %c0_i32_0 = arith.constant 0 : i32
    return %arg0, %c0_i32, %arg1 : i32, i32, i32
  }
  func.func @transform_4(%arg0: i32, %arg1: i32) -> (i32, i32, i32) {
    %c0_i32 = arith.constant 0 : i32
    %c0_i32_0 = arith.constant 0 : i32
    return %arg0, %c0_i32, %arg1 : i32, i32, i32
  }
}

</mosaic_0001>

<llo_original>
// kernel: tpu_custom_call.1
$region0: #{tpu_custom_call.1}
  #allocation0 [shape = 'u32[]', space=smem, size = 0x4, offset = 0x4, fixed_abs, tag = 'smem constant byte address 0x4 - core index']
  #allocation1 [shape = 'u32[144,128]{1,0:T(1,128)}', space=vmem, size = 0x12000, scoped, tag = 'internal scratch']
  %s0 = inlined_call_operand.vmem [shape: bf16[384,8], index: 0, kind: input, shape index: {}]
  %s1 = inlined_call_operand.vmem [shape: bf16[2,8,512], index: 1, kind: input, shape index: {}]
  %s2 = inlined_call_operand.hbm [shape: bf16[2,128,512], index: 2, kind: output, shape index: {0}]
  %s3 = inlined_call_operand.hbm [shape: bf16[2,128,512], index: 3, kind: output, shape index: {1}]
  %s4 = inlined_call_operand.hbm [shape: bf16[2,128,512], index: 4, kind: output, shape index: {2}]
  %5 = xla_tuple %s2, %s3, %s4
  %s6 = sld [smem:[#allocation0]]
  $region57: #{tpu_custom_call.1} parent=0
    _
  %s8 = ssub.s32 1, %s6
  %s9 = scalar_select 0, %s8, %s6
  $region1: #{tpu_custom_call.1} parent=0
    #allocation2 [shape = 'u8[262144]{0}', space=vmem, size = 0x40000, scoped, tag = 'output window, operand 0']
    #allocation3 [shape = 's32[2]{0}', space=sflag, size = 0x8, scoped, tag = 'scoped memory for tpu_custom_call.1']
    #allocation4 [shape = 'u8[262144]{0}', space=vmem, size = 0x40000, scoped, tag = 'output window, operand 1']
    #allocation5 [shape = 's32[2]{0}', space=sflag, size = 0x8, scoped, tag = 'scoped memory for tpu_custom_call.1']
    #allocation6 [shape = 'u8[262144]{0}', space=vmem, size = 0x40000, scoped, tag = 'output window, operand 2']
    %10 = vsyncpa [#allocation3], 0
    %s11 = scalar_lea.sflag [#allocation3], 1
    %12 = vsyncpa %s11, 0
    %13 = vsyncpa [#allocation5], 0
    %s14 = scalar_lea.sflag [#allocation5], 1
    %15 = vsyncpa %s14, 0
    loop: start=0, step=1, limit=4
    $region2: #{tpu_custom_call.1} parent=1 // loop_pre_header
      _
    $region3: #{tpu_custom_call.1} parent=1 // loop_header
      %s17 = sphi 0, %s21
      %p18 = scmp.ge.s32.totalorder %s17, 4
      %s24 = sphi 0, %s36
      %s25 = sphi 0, %s32
      %s26 = sphi 0, %s24
      %s27 = sphi 0, %s25
      %s28 = sphi 0, %s26
      %s29 = sphi 0, %s27
      %s37 = sphi 0, %s37
      %s39 = sphi 0, %s37
      %s40 = sphi 0, %s39
      %s54 = sphi 0, %s40
      %s62 = sphi 0, %s64
      %s65 = sphi 0, %s62
      %s66 = sphi 0, %s65
      %s82 = sphi 0, %s66
      %s90 = sphi 0, %s92
      %s93 = sphi 0, %s90
      %s94 = sphi 0, %s93
      %s110 = sphi 0, %s94
      %s118 = sphi 0, %s120
      %s121 = sphi 0, %s118
      %s122 = sphi 0, %s121
      %s138 = sphi 0, %s122
      %s146 = sphi 0, %s148
      %s149 = sphi 0, %s146
      %s150 = sphi 0, %s149
      %s166 = sphi 0, %s150
    $region4: #{tpu_custom_call.1} parent=1 // loop_header_branch
      %20 = sbr.rel (%p18) target = $region8
    $region5: #{tpu_custom_call.1} parent=1 // loop_body
      %s22 = ssub.s32 %s17, 1
      %s23 = ssub.s32 %s17, 2
      %s30 = sadd.s32 1, %s25
      %p31 = scmp.ge.s32.totalorder %s30, 1
      %s32 = scalar_select %p31, 0, %s30
      %s33 = sadd.s32 1, %s24
      %s34 = scalar_select %p31, %s33, %s24
      %p35 = scmp.ge.s32.totalorder %s34, 2
      %s36 = scalar_select %p35, 0, %s34
      %s38 = sadd.s32 %s37, 1
      %p41 = scmp.eq.s32.totalorder %s17, 1
      %p42 = scmp.ne.s32.totalorder %s37, %s39
      %p43 = scmp.eq.s32.totalorder %s17, 0
      %p44 = por %p42, %p43
      %p45 = scmp.ne.s32.totalorder %s37, %s39
      %p46 = scmp.eq.s32.totalorder %s22, 1
      %p47 = por %p45, %p46
      %p48 = scmp.ne.s32.totalorder %s39, %s40
      %p49 = scmp.eq.s32.totalorder %s22, 0
      %p50 = por %p48, %p49
      %p51 = scmp.ne.s32.totalorder %s39, %s40
      %p52 = scmp.eq.s32.totalorder %s23, 1
      %p53 = por %p51, %p52
      %p55 = scmp.ne.s32.totalorder %s40, %s54
      %p56 = scmp.eq.s32.totalorder %s23, 0
      %p57 = por %p55, %p56
      %s58 = ssub.s32 %s24, %s36
      %s59 = ssub.s32 %s25, %s32
      %s60 = sor.u32 %s58, %s59
      %p61 = scmp.eq.s32.totalorder %s60, 0
      %s63 = sadd.s32 %s62, 1
      %s64 = scalar_select %p61, %s62, %s63
      %p67 = pneg %p61
      %p68 = scmp.eq.s32.totalorder %s17, 1
      %p69 = por %p67, %p68
      %p70 = scmp.ne.s32.totalorder %s62, %s65
      %p71 = scmp.eq.s32.totalorder %s17, 0
      %p72 = por %p70, %p71
      %p73 = scmp.ne.s32.totalorder %s62, %s65
      %p74 = scmp.eq.s32.totalorder %s22, 1
      %p75 = por %p73, %p74
      %p76 = scmp.ne.s32.totalorder %s65, %s66
      %p77 = scmp.eq.s32.totalorder %s22, 0
      %p78 = por %p76, %p77
      %p79 = scmp.ne.s32.totalorder %s65, %s66
      %p80 = scmp.eq.s32.totalorder %s23, 1
      %p81 = por %p79, %p80
      %p83 = scmp.ne.s32.totalorder %s66, %s82
      %p84 = scmp.eq.s32.totalorder %s23, 0
      %p85 = por %p83, %p84
      %s86 = ssub.s32 %s24, %s36
      %s87 = ssub.s32 %s25, %s32
      %s88 = sor.u32 %s86, %s87
      %p89 = scmp.eq.s32.totalorder %s88, 0
      %s91 = sadd.s32 %s90, 1
      %s92 = scalar_select %p89, %s90, %s91
      %p95 = pneg %p89
      %p96 = scmp.eq.s32.totalorder %s17, 1
      %p97 = por %p95, %p96
      %p98 = scmp.ne.s32.totalorder %s90, %s93
      %p99 = scmp.eq.s32.totalorder %s17, 0
      %p100 = por %p98, %p99
      %p101 = scmp.ne.s32.totalorder %s90, %s93
      %p102 = scmp.eq.s32.totalorder %s22, 1
      %p103 = por %p101, %p102
      %p104 = scmp.ne.s32.totalorder %s93, %s94
      %p105 = scmp.eq.s32.totalorder %s22, 0
      %p106 = por %p104, %p105
      %p107 = scmp.ne.s32.totalorder %s93, %s94
      %p108 = scmp.eq.s32.totalorder %s23, 1
      %p109 = por %p107, %p108
      %p111 = scmp.ne.s32.totalorder %s94, %s110
      %p112 = scmp.eq.s32.totalorder %s23, 0
      %p113 = por %p111, %p112
      %s114 = ssub.s32 %s24, %s36
      %s115 = ssub.s32 %s25, %s32
      %s116 = sor.u32 %s114, %s115
      %p117 = scmp.eq.s32.totalorder %s116, 0
      %s119 = sadd.s32 %s118, 1
      %s120 = scalar_select %p117, %s118, %s119
      %p123 = pneg %p117
      %p124 = scmp.eq.s32.totalorder %s17, 1
      %p125 = por %p123, %p124
      %p126 = scmp.ne.s32.totalorder %s118, %s121
      %p127 = scmp.eq.s32.totalorder %s17, 0
      %p128 = por %p126, %p127
      %p129 = scmp.ne.s32.totalorder %s118, %s121
      %p130 = scmp.eq.s32.totalorder %s22, 1
      %p131 = por %p129, %p130
      %p132 = scmp.ne.s32.totalorder %s121, %s122
      %p133 = scmp.eq.s32.totalorder %s22, 0
      %p134 = por %p132, %p133
      %p135 = scmp.ne.s32.totalorder %s121, %s122
      %p136 = scmp.eq.s32.totalorder %s23, 1
      %p137 = por %p135, %p136
      %p139 = scmp.ne.s32.totalorder %s122, %s138
      %p140 = scmp.eq.s32.totalorder %s23, 0
      %p141 = por %p139, %p140
      %s142 = ssub.s32 %s24, %s36
      %s143 = ssub.s32 %s25, %s32
      %s144 = sor.u32 %s142, %s143
      %p145 = scmp.eq.s32.totalorder %s144, 0
      %s147 = sadd.s32 %s146, 1
      %s148 = scalar_select %p145, %s146, %s147
      %p151 = pneg %p145
      %p152 = scmp.eq.s32.totalorder %s17, 1
      %p153 = por %p151, %p152
      %p154 = scmp.ne.s32.totalorder %s146, %s149
      %p155 = scmp.eq.s32.totalorder %s17, 0
      %p156 = por %p154, %p155
      %p157 = scmp.ne.s32.totalorder %s146, %s149
      %p158 = scmp.eq.s32.totalorder %s22, 1
      %p159 = por %p157, %p158
      %p160 = scmp.ne.s32.totalorder %s149, %s150
      %p161 = scmp.eq.s32.totalorder %s22, 0
      %p162 = por %p160, %p161
      %p163 = scmp.ne.s32.totalorder %s149, %s150
      %p164 = scmp.eq.s32.totalorder %s23, 1
      %p165 = por %p163, %p164
      %p167 = scmp.ne.s32.totalorder %s150, %s166
      %p168 = scmp.eq.s32.totalorder %s23, 0
      %p169 = por %p167, %p168
      %p170 = scmp.le.s32.totalorder 1, %s17
      %p171 = scmp.lt.s32.totalorder %s17, 3
      %p172 = pnand %p170, %p171
      %p173 = pneg %p172
      // Predicated region
      $region9: #{tpu_custom_call.1} parent=5 // pred_check
        _
      $region10: #{tpu_custom_call.1} parent=5 // pred_check_branch
        %175 = sbr.rel (%p172) target = $region12
      $region11: #{tpu_custom_call.1} parent=5 // pred_region
        %s176 = ssub.s32 %s17, 1
        // Predicated region
        $region13: #{tpu_custom_call.1} parent=11 // pred_check
          %p177 = pneg %p50
        $region14: #{tpu_custom_call.1} parent=11 // pred_check_branch
          %179 = sbr.rel (%p177) target = $region16
        $region15: #{tpu_custom_call.1} parent=11 // pred_region
          _
        $region16: #{tpu_custom_call.1} parent=11 // pred_fallthru
          _
      $region12: #{tpu_custom_call.1} parent=5 // pred_fallthru
        _
      %p180 = scmp.lt.s32.totalorder %s17, 2
      // Predicated region
      $region17: #{tpu_custom_call.1} parent=5 // pred_check
        %p181 = pneg %p180
      $region18: #{tpu_custom_call.1} parent=5 // pred_check_branch
        %183 = sbr.rel (%p181) target = $region20
      $region19: #{tpu_custom_call.1} parent=5 // pred_region
        // Predicated region
        $region21: #{tpu_custom_call.1} parent=19 // pred_check
          %p184 = pneg %p72
        $region22: #{tpu_custom_call.1} parent=19 // pred_check_branch
          %186 = sbr.rel (%p184) target = $region24
        $region23: #{tpu_custom_call.1} parent=19 // pred_region
          %s187 = smul.u32 4, %s25
          %p188 = scmp.lt.s32.totalorder %s24, 1
          %s189 = scalar_select %p188, %s24, 1
          %p190 = scmp.lt.s32.totalorder %s187, 3
          %s191 = scalar_select %p190, %s187, 3
          %s192 = smul.addr %s189, 4
          %s193 = sadd.s32 %s191, %s192
          %s194 = smul.addr %s193, 4
          %s195 = scalar_lea.vmem %s1, %s194
          %s196 = smul.u32 4, %s25
        $region24: #{tpu_custom_call.1} parent=19 // pred_fallthru
          _
      $region20: #{tpu_custom_call.1} parent=5 // pred_fallthru
        _
      %p197 = scmp.le.s32.totalorder 1, %s17
      %p198 = scmp.lt.s32.totalorder %s17, 3
      %p199 = pnand %p197, %p198
      %p200 = pneg %p199
      // Predicated region
      $region25: #{tpu_custom_call.1} parent=5 // pred_check
        _
      $region26: #{tpu_custom_call.1} parent=5 // pred_check_branch
        %202 = sbr.rel (%p199) target = $region28
      $region27: #{tpu_custom_call.1} parent=5 // pred_region
        %s203 = ssub.s32 %s17, 1
        %p204 = pneg %p50
        %p205 = pneg %p47
        %s206 = smul.u32 4, %s27
        %p207 = scmp.lt.s32.totalorder %s26, 1
        %s208 = scalar_select %p207, %s26, 1
        %p209 = scmp.lt.s32.totalorder %s206, 3
        %s210 = scalar_select %p209, %s206, 3
        %s211 = smul.addr %s208, 4
        %s212 = sadd.s32 %s210, %s211
        %s213 = smul.addr %s212, 4
        %s214 = scalar_lea.vmem %s1, %s213
        %p215 = pneg %p78
        %p216 = pneg %p75
        %p217 = pneg %p106
        %p218 = pneg %p103
        %s219 = sand.u32 %s93, 1
        %s220 = scalar_lea.sflag [#allocation3], %s219
        %s221 = sand.u32 %s93, 1
        %s222 = smul.addr %s221, 256
        %s223 = scalar_lea.vmem [#allocation2], %s222
        %p224 = pneg %p134
        %p225 = pneg %p131
        %s226 = sand.u32 %s22, 1
        %s227 = scalar_lea.sflag [#allocation5], %s226
        %s228 = sand.u32 %s121, 1
        %s229 = smul.addr %s228, 256
        %s230 = scalar_lea.vmem [#allocation4], %s229
        %p231 = pneg %p162
        %p232 = pneg %p159
        %s233 = sand.u32 %s22, 1
        %s234 = scalar_lea.sflag [#allocation5], %s233
        %s235 = sand.u32 %s149, 1
        %s236 = smul.addr %s235, 256
        %s237 = scalar_lea.vmem [#allocation6], %s236
        %s238 = smul.u32 4, %s27
        %p239 = scmp.lt.s32.totalorder %s26, 1
        %s240 = scalar_select %p239, %s26, 1
        %p241 = scmp.lt.s32.totalorder %s238, 3
        %s242 = scalar_select %p241, %s238, 3
        %s243 = smul.addr %s240, 4
        %s244 = sadd.s32 %s242, %s243
        %s245 = smul.addr %s244, 4
        %s246 = scalar_lea.vmem %s1, %s245
        %s247 = smul.u32 4, %s27
        %s248 = smul.u32 4, %s27
        %s249 = smul.u32 4, %s27
        %s250 = smul.u32 4, %s27
        %v252 = vld [vmem:[%s0] sm:$0xf]
        %v253 = vld [vmem:[%s0 + $0x4] sm:$0xf]
        %v254 = vld [vmem:[%s0 + $0x8] sm:$0xf]
        %v255 = vld [vmem:[%s0 + $0xc] sm:$0xf]
        %v256 = vld [vmem:[%s0 + $0x10] sm:$0xf]
        %v257 = vld [vmem:[%s0 + $0x14] sm:$0xf]
        %v258 = vld [vmem:[%s0 + $0x18] sm:$0xf]
        %v259 = vld [vmem:[%s0 + $0x1c] sm:$0xf]
        %v260 = vld [vmem:[%s0 + $0x20] sm:$0xf]
        %v261 = vld [vmem:[%s0 + $0x24] sm:$0xf]
        %v262 = vld [vmem:[%s0 + $0x28] sm:$0xf]
        %v263 = vld [vmem:[%s0 + $0x2c] sm:$0xf]
        %v264 = vld [vmem:[%s0 + $0x30] sm:$0xf]
        %v265 = vld [vmem:[%s0 + $0x34] sm:$0xf]
        %v266 = vld [vmem:[%s0 + $0x38] sm:$0xf]
        %v267 = vld [vmem:[%s0 + $0x3c] sm:$0xf]
        %v268 = vld [vmem:[%s0 + $0x40] sm:$0xf]
        %v269 = vld [vmem:[%s0 + $0x44] sm:$0xf]
        %v270 = vld [vmem:[%s0 + $0x48] sm:$0xf]
        %v271 = vld [vmem:[%s0 + $0x4c] sm:$0xf]
        %v272 = vld [vmem:[%s0 + $0x50] sm:$0xf]
        %v273 = vld [vmem:[%s0 + $0x54] sm:$0xf]
        %v274 = vld [vmem:[%s0 + $0x58] sm:$0xf]
        %v275 = vld [vmem:[%s0 + $0x5c] sm:$0xf]
        %v276 = vld [vmem:[%s0 + $0x60] sm:$0xf]
        %v277 = vld [vmem:[%s0 + $0x64] sm:$0xf]
        %v278 = vld [vmem:[%s0 + $0x68] sm:$0xf]
        %v279 = vld [vmem:[%s0 + $0x6c] sm:$0xf]
        %v280 = vld [vmem:[%s0 + $0x70] sm:$0xf]
        %v281 = vld [vmem:[%s0 + $0x74] sm:$0xf]
        %v282 = vld [vmem:[%s0 + $0x78] sm:$0xf]
        %v283 = vld [vmem:[%s0 + $0x7c] sm:$0xf]
        %v284 = vld [vmem:[%s0 + $0x80] sm:$0xf]
        %v285 = vld [vmem:[%s0 + $0x84] sm:$0xf]
        %v286 = vld [vmem:[%s0 + $0x88] sm:$0xf]
        %v287 = vld [vmem:[%s0 + $0x8c] sm:$0xf]
        %v288 = vld [vmem:[%s0 + $0x90] sm:$0xf]
        %v289 = vld [vmem:[%s0 + $0x94] sm:$0xf]
        %v290 = vld [vmem:[%s0 + $0x98] sm:$0xf]
        %v291 = vld [vmem:[%s0 + $0x9c] sm:$0xf]
        %v292 = vld [vmem:[%s0 + $0xa0] sm:$0xf]
        %v293 = vld [vmem:[%s0 + $0xa4] sm:$0xf]
        %v294 = vld [vmem:[%s0 + $0xa8] sm:$0xf]
        %v295 = vld [vmem:[%s0 + $0xac] sm:$0xf]
        %v296 = vld [vmem:[%s0 + $0xb0] sm:$0xf]
        %v297 = vld [vmem:[%s0 + $0xb4] sm:$0xf]
        %v298 = vld [vmem:[%s0 + $0xb8] sm:$0xf]
        %v299 = vld [vmem:[%s0 + $0xbc] sm:$0xf]
        %v300 = vld [vmem:[%s246] sm:$0xff]
        %v301 = vld [vmem:[%s246 + $0x8] sm:$0xff]
        %v350 = vunpack.c.l.b16 %v252
        %v351 = vunpack.c.l.b16 %v253
        %v352 = vunpack.c.l.b16 %v254
        %v353 = vunpack.c.l.b16 %v255
        %v354 = vunpack.c.l.b16 %v256
        %v355 = vunpack.c.l.b16 %v257
        %v356 = vunpack.c.l.b16 %v258
        %v357 = vunpack.c.l.b16 %v259
        %v358 = vunpack.c.l.b16 %v260
        %v359 = vunpack.c.l.b16 %v261
        %v360 = vunpack.c.l.b16 %v262
        %v361 = vunpack.c.l.b16 %v263
        %v362 = vunpack.c.l.b16 %v264
        %v363 = vunpack.c.l.b16 %v265
        %v364 = vunpack.c.l.b16 %v266
        %v365 = vunpack.c.l.b16 %v267
        %v366 = vunpack.c.l.b16 %v268
        %v367 = vunpack.c.l.b16 %v269
        %v368 = vunpack.c.l.b16 %v270
        %v369 = vunpack.c.l.b16 %v271
        %v370 = vunpack.c.l.b16 %v272
        %v371 = vunpack.c.l.b16 %v273
        %v372 = vunpack.c.l.b16 %v274
        %v373 = vunpack.c.l.b16 %v275
        %v374 = vunpack.c.l.b16 %v276
        %v375 = vunpack.c.l.b16 %v277
        %v376 = vunpack.c.l.b16 %v278
        %v377 = vunpack.c.l.b16 %v279
        %v378 = vunpack.c.l.b16 %v280
        %v379 = vunpack.c.l.b16 %v281
        %v380 = vunpack.c.l.b16 %v282
        %v381 = vunpack.c.l.b16 %v283
        %v382 = vunpack.c.l.b16 %v284
        %v383 = vunpack.c.l.b16 %v285
        %v384 = vunpack.c.l.b16 %v286
        %v385 = vunpack.c.l.b16 %v287
        %v386 = vunpack.c.l.b16 %v288
        %v387 = vunpack.c.l.b16 %v289
        %v388 = vunpack.c.l.b16 %v290
        %v389 = vunpack.c.l.b16 %v291
        %v390 = vunpack.c.l.b16 %v292
        %v391 = vunpack.c.l.b16 %v293
        %v392 = vunpack.c.l.b16 %v294
        %v393 = vunpack.c.l.b16 %v295
        %v394 = vunpack.c.l.b16 %v296
        %v395 = vunpack.c.l.b16 %v297
        %v396 = vunpack.c.l.b16 %v298
        %v397 = vunpack.c.l.b16 %v299
        %v398 = vpack.c.b16 %v351, %v350
        %v399 = vpack.c.b16 %v353, %v352
        %v400 = vpack.c.b16 %v355, %v354
        %v401 = vpack.c.b16 %v357, %v356
        %v402 = vpack.c.b16 %v359, %v358
        %v403 = vpack.c.b16 %v361, %v360
        %v404 = vpack.c.b16 %v363, %v362
        %v405 = vpack.c.b16 %v365, %v364
        %v406 = vpack.c.b16 %v367, %v366
        %v407 = vpack.c.b16 %v369, %v368
        %v408 = vpack.c.b16 %v371, %v370
        %v409 = vpack.c.b16 %v373, %v372
        %v410 = vpack.c.b16 %v375, %v374
        %v411 = vpack.c.b16 %v377, %v376
        %v412 = vpack.c.b16 %v379, %v378
        %v413 = vpack.c.b16 %v381, %v380
        %v414 = vpack.c.b16 %v383, %v382
        %v415 = vpack.c.b16 %v385, %v384
        %v416 = vpack.c.b16 %v387, %v386
        %v417 = vpack.c.b16 %v389, %v388
        %v418 = vpack.c.b16 %v391, %v390
        %v419 = vpack.c.b16 %v393, %v392
        %v420 = vpack.c.b16 %v395, %v394
        %v421 = vpack.c.b16 %v397, %v396
        %v424 = vunpack.c.l.b16 %v300
        %v425 = vunpack.c.h.b16 %v300
        %v426 = vunpack.c.l.b16 %v301
        %v427 = vunpack.c.h.b16 %v301
        %v428 = vpack.c.b16 %v424, %v424
        %v429 = vpack.c.b16 %v425, %v425
        %v430 = vpack.c.b16 %v426, %v426
        %v431 = vpack.c.b16 %v427, %v427
        %vm432 = vcmask 64512
        %v434 = vsel %vm432, %v398, 0
        %v437 = vsel %vm432, %v399, 0
        %v440 = vsel %vm432, %v400, 0
        %v443 = vsel %vm432, %v401, 0
        %v446 = vsel %vm432, %v402, 0
        %v449 = vsel %vm432, %v403, 0
        %v452 = vsel %vm432, %v404, 0
        %v455 = vsel %vm432, %v405, 0
        %v458 = vsel %vm432, %v406, 0
        %v461 = vsel %vm432, %v407, 0
        %v464 = vsel %vm432, %v408, 0
        %v467 = vsel %vm432, %v409, 0
        %v470 = vsel %vm432, %v410, 0
        %v473 = vsel %vm432, %v411, 0
        %v476 = vsel %vm432, %v412, 0
        %v479 = vsel %vm432, %v413, 0
        %v482 = vsel %vm432, %v414, 0
        %v485 = vsel %vm432, %v415, 0
        %v488 = vsel %vm432, %v416, 0
        %v491 = vsel %vm432, %v417, 0
        %v494 = vsel %vm432, %v418, 0
        %v497 = vsel %vm432, %v419, 0
        %v500 = vsel %vm432, %v420, 0
        %v503 = vsel %vm432, %v421, 0
        %vm505 = vcmask 1043456
        %v507 = vsel %vm505, %v428, 0
        %v510 = vsel %vm505, %v429, 0
        %v513 = vsel %vm505, %v430, 0
        %v516 = vsel %vm505, %v431, 0
        %518 = vmatprep.subr.bf16.mxu0 %v510
        %519 = vmatpush1.bf16.msra.mxu0 %v507
        %520 = vmatprep.subr.bf16.mxu0 0
        %521 = vmatpush1.bf16.msra.mxu0 0
        %522 = vmatprep.subr.bf16.mxu0 0
        %523 = vmatpush1.bf16.msra.mxu0 0
        %524 = vmatprep.subr.bf16.mxu0 0
        %525 = vmatpush1.bf16.msra.mxu0 0
        %526 = vmatprep.subr.bf16.mxu0 0
        %527 = vmatpush1.bf16.msra.mxu0 0
        %528 = vmatprep.subr.bf16.mxu0 0
        %529 = vmatpush1.bf16.msra.mxu0 0
        %530 = vmatprep.subr.bf16.mxu0 0
        %531 = vmatpush1.bf16.msra.mxu0 0
        %532 = vmatprep.subr.bf16.mxu0 0
        %533 = vmatpush1.bf16.msra.mxu0 0
        %534 = vmatprep.subr.bf16.mxu0 0
        %535 = vmatpush1.bf16.msra.mxu0 0
        %536 = vmatprep.subr.bf16.mxu0 0
        %537 = vmatpush1.bf16.msra.mxu0 0
        %538 = vmatprep.subr.bf16.mxu0 0
        %539 = vmatpush1.bf16.msra.mxu0 0
        %540 = vmatprep.subr.bf16.mxu0 0
        %541 = vmatpush1.bf16.msra.mxu0 0
        %542 = vmatprep.subr.bf16.mxu0 0
        %543 = vmatpush1.bf16.msra.mxu0 0
        %544 = vmatprep.subr.bf16.mxu0 0
        %545 = vmatpush1.bf16.msra.mxu0 0
        %546 = vmatprep.subr.bf16.mxu0 0
        %547 = vmatpush1.bf16.msra.mxu0 0
        %548 = vmatprep.subr.bf16.mxu0 0
        %549 = vmatpush1.bf16.msra.mxu0 0
        %550 = vmatprep.mubr.bf16.mxu0 0
        %551 = vmatmul.mubr.bf16.gmra.mrb[0].mxu0 %v434
        %v552 = vpop.f32.mrb[0].mxu0
        %v553 = vadd.f32 0.0, %v552
        %v554 = vpop.f32.mrb[0].mxu0
        %v555 = vadd.f32 0.0, %v554
        %v556 = vpop.f32.mrb[0].mxu0
        %v557 = vadd.f32 0.0, %v556
        %v558 = vpop.f32.mrb[0].mxu0
        %v559 = vadd.f32 0.0, %v558
        %560 = vmatprep.mubr.bf16.mxu0 0
        %561 = vmatmul.mubr.bf16.gmra.mrb[0].mxu0 %v437
        %v562 = vpop.f32.mrb[0].mxu0
        %v563 = vadd.f32 0.0, %v562
        %v564 = vpop.f32.mrb[0].mxu0
        %v565 = vadd.f32 0.0, %v564
        %v566 = vpop.f32.mrb[0].mxu0
        %v567 = vadd.f32 0.0, %v566
        %v568 = vpop.f32.mrb[0].mxu0
        %v569 = vadd.f32 0.0, %v568
        %570 = vmatprep.mubr.bf16.mxu0 0
        %571 = vmatmul.mubr.bf16.gmra.mrb[0].mxu0 %v440
        %v572 = vpop.f32.mrb[0].mxu0
        %v573 = vadd.f32 0.0, %v572
        %v574 = vpop.f32.mrb[0].mxu0
        %v575 = vadd.f32 0.0, %v574
        %v576 = vpop.f32.mrb[0].mxu0
        %v577 = vadd.f32 0.0, %v576
        %v578 = vpop.f32.mrb[0].mxu0
        %v579 = vadd.f32 0.0, %v578
        %580 = vmatprep.mubr.bf16.mxu0 0
        %581 = vmatmul.mubr.bf16.gmra.mrb[0].mxu0 %v443
        %v582 = vpop.f32.mrb[0].mxu0
        %v583 = vadd.f32 0.0, %v582
        %v584 = vpop.f32.mrb[0].mxu0
        %v585 = vadd.f32 0.0, %v584
        %v586 = vpop.f32.mrb[0].mxu0
        %v587 = vadd.f32 0.0, %v586
        %v588 = vpop.f32.mrb[0].mxu0
        %v589 = vadd.f32 0.0, %v588
        %590 = vmatprep.mubr.bf16.mxu0 0
        %591 = vmatmul.mubr.bf16.gmra.mrb[0].mxu0 %v446
        %v592 = vpop.f32.mrb[0].mxu0
        %v593 = vadd.f32 0.0, %v592
        %v594 = vpop.f32.mrb[0].mxu0
        %v595 = vadd.f32 0.0, %v594
        %v596 = vpop.f32.mrb[0].mxu0
        %v597 = vadd.f32 0.0, %v596
        %v598 = vpop.f32.mrb[0].mxu0
        %v599 = vadd.f32 0.0, %v598
        %600 = vmatprep.mubr.bf16.mxu0 0
        %601 = vmatmul.mubr.bf16.gmra.mrb[0].mxu0 %v449
        %v602 = vpop.f32.mrb[0].mxu0
        %v603 = vadd.f32 0.0, %v602
        %v604 = vpop.f32.mrb[0].mxu0
        %v605 = vadd.f32 0.0, %v604
        %v606 = vpop.f32.mrb[0].mxu0
        %v607 = vadd.f32 0.0, %v606
        %v608 = vpop.f32.mrb[0].mxu0
        %v609 = vadd.f32 0.0, %v608
        %610 = vmatprep.mubr.bf16.mxu0 0
        %611 = vmatmul.mubr.bf16.gmra.mrb[0].mxu0 %v452
        %v612 = vpop.f32.mrb[0].mxu0
        %v613 = vadd.f32 0.0, %v612
        %v614 = vpop.f32.mrb[0].mxu0
        %v615 = vadd.f32 0.0, %v614
        %v616 = vpop.f32.mrb[0].mxu0
        %v617 = vadd.f32 0.0, %v616
        %v618 = vpop.f32.mrb[0].mxu0
        %v619 = vadd.f32 0.0, %v618
        %620 = vmatprep.mubr.bf16.mxu0 0
        %621 = vmatmul.mubr.bf16.gmra.mrb[0].mxu0 %v455
        %v622 = vpop.f32.mrb[0].mxu0
        %v623 = vadd.f32 0.0, %v622
        %v624 = vpop.f32.mrb[0].mxu0
        %v625 = vadd.f32 0.0, %v624
        %v626 = vpop.f32.mrb[0].mxu0
        %v627 = vadd.f32 0.0, %v626
        %v628 = vpop.f32.mrb[0].mxu0
        %v629 = vadd.f32 0.0, %v628
        %630 = vmatprep.mubr.bf16.mxu0 0
        %631 = vmatmul.mubr.bf16.gmra.mrb[0].mxu0 %v458
        %v632 = vpop.f32.mrb[0].mxu0
        %v633 = vadd.f32 0.0, %v632
        %v634 = vpop.f32.mrb[0].mxu0
        %v635 = vadd.f32 0.0, %v634
        %v636 = vpop.f32.mrb[0].mxu0
        %v637 = vadd.f32 0.0, %v636
        %v638 = vpop.f32.mrb[0].mxu0
        %v639 = vadd.f32 0.0, %v638
        %640 = vmatprep.mubr.bf16.mxu0 0
        %641 = vmatmul.mubr.bf16.gmra.mrb[0].mxu0 %v461
        %v642 = vpop.f32.mrb[0].mxu0
        %v643 = vadd.f32 0.0, %v642
        %v644 = vpop.f32.mrb[0].mxu0
        %v645 = vadd.f32 0.0, %v644
        %v646 = vpop.f32.mrb[0].mxu0
        %v647 = vadd.f32 0.0, %v646
        %v648 = vpop.f32.mrb[0].mxu0
        %v649 = vadd.f32 0.0, %v648
        %650 = vmatprep.mubr.bf16.mxu0 0
        %651 = vmatmul.mubr.bf16.gmra.mrb[0].mxu0 %v464
        %v652 = vpop.f32.mrb[0].mxu0
        %v653 = vadd.f32 0.0, %v652
        %v654 = vpop.f32.mrb[0].mxu0
        %v655 = vadd.f32 0.0, %v654
        %v656 = vpop.f32.mrb[0].mxu0
        %v657 = vadd.f32 0.0, %v656
        %v658 = vpop.f32.mrb[0].mxu0
        %v659 = vadd.f32 0.0, %v658
        %660 = vmatprep.mubr.bf16.mxu0 0
        %661 = vmatmul.mubr.bf16.gmra.mrb[0].mxu0 %v467
        %v662 = vpop.f32.mrb[0].mxu0
        %v663 = vadd.f32 0.0, %v662
        %v664 = vpop.f32.mrb[0].mxu0
        %v665 = vadd.f32 0.0, %v664
        %v666 = vpop.f32.mrb[0].mxu0
        %v667 = vadd.f32 0.0, %v666
        %v668 = vpop.f32.mrb[0].mxu0
        %v669 = vadd.f32 0.0, %v668
        %670 = vmatprep.mubr.bf16.mxu0 0
        %671 = vmatmul.mubr.bf16.gmra.mrb[0].mxu0 %v470
        %v672 = vpop.f32.mrb[0].mxu0
        %v673 = vadd.f32 0.0, %v672
        %v674 = vpop.f32.mrb[0].mxu0
        %v675 = vadd.f32 0.0, %v674
        %v676 = vpop.f32.mrb[0].mxu0
        %v677 = vadd.f32 0.0, %v676
        %v678 = vpop.f32.mrb[0].mxu0
        %v679 = vadd.f32 0.0, %v678
        %680 = vmatprep.mubr.bf16.mxu0 0
        %681 = vmatmul.mubr.bf16.gmra.mrb[0].mxu0 %v473
        %v682 = vpop.f32.mrb[0].mxu0
        %v683 = vadd.f32 0.0, %v682
        %v684 = vpop.f32.mrb[0].mxu0
        %v685 = vadd.f32 0.0, %v684
        %v686 = vpop.f32.mrb[0].mxu0
        %v687 = vadd.f32 0.0, %v686
        %v688 = vpop.f32.mrb[0].mxu0
        %v689 = vadd.f32 0.0, %v688
        %690 = vmatprep.mubr.bf16.mxu0 0
        %691 = vmatmul.mubr.bf16.gmra.mrb[0].mxu0 %v476
        %v692 = vpop.f32.mrb[0].mxu0
        %v693 = vadd.f32 0.0, %v692
        %v694 = vpop.f32.mrb[0].mxu0
        %v695 = vadd.f32 0.0, %v694
        %v696 = vpop.f32.mrb[0].mxu0
        %v697 = vadd.f32 0.0, %v696
        %v698 = vpop.f32.mrb[0].mxu0
        %v699 = vadd.f32 0.0, %v698
        %700 = vmatprep.mubr.bf16.mxu0 0
        %701 = vmatmul.mubr.bf16.gmra.mrb[0].mxu0 %v479
        %v702 = vpop.f32.mrb[0].mxu0
        %v703 = vadd.f32 0.0, %v702
        %v704 = vpop.f32.mrb[0].mxu0
        %v705 = vadd.f32 0.0, %v704
        %v706 = vpop.f32.mrb[0].mxu0
        %v707 = vadd.f32 0.0, %v706
        %v708 = vpop.f32.mrb[0].mxu0
        %v709 = vadd.f32 0.0, %v708
        %710 = vmatprep.mubr.bf16.mxu0 0
        %711 = vmatmul.mubr.bf16.gmra.mrb[0].mxu0 %v482
        %v712 = vpop.f32.mrb[0].mxu0
        %v713 = vadd.f32 0.0, %v712
        %v714 = vpop.f32.mrb[0].mxu0
        %v715 = vadd.f32 0.0, %v714
        %v716 = vpop.f32.mrb[0].mxu0
        %v717 = vadd.f32 0.0, %v716
        %v718 = vpop.f32.mrb[0].mxu0
        %v719 = vadd.f32 0.0, %v718
        %720 = vmatprep.mubr.bf16.mxu0 0
        %721 = vmatmul.mubr.bf16.gmra.mrb[0].mxu0 %v485
        %v722 = vpop.f32.mrb[0].mxu0
        %v723 = vadd.f32 0.0, %v722
        %v724 = vpop.f32.mrb[0].mxu0
        %v725 = vadd.f32 0.0, %v724
        %v726 = vpop.f32.mrb[0].mxu0
        %v727 = vadd.f32 0.0, %v726
        %v728 = vpop.f32.mrb[0].mxu0
        %v729 = vadd.f32 0.0, %v728
        %730 = vmatprep.mubr.bf16.mxu0 0
        %731 = vmatmul.mubr.bf16.gmra.mrb[0].mxu0 %v488
        %v732 = vpop.f32.mrb[0].mxu0
        %v733 = vadd.f32 0.0, %v732
        %v734 = vpop.f32.mrb[0].mxu0
        %v735 = vadd.f32 0.0, %v734
        %v736 = vpop.f32.mrb[0].mxu0
        %v737 = vadd.f32 0.0, %v736
        %v738 = vpop.f32.mrb[0].mxu0
        %v739 = vadd.f32 0.0, %v738
        %740 = vmatprep.mubr.bf16.mxu0 0
        %741 = vmatmul.mubr.bf16.gmra.mrb[0].mxu0 %v491
        %v742 = vpop.f32.mrb[0].mxu0
        %v743 = vadd.f32 0.0, %v742
        %v744 = vpop.f32.mrb[0].mxu0
        %v745 = vadd.f32 0.0, %v744
        %v746 = vpop.f32.mrb[0].mxu0
        %v747 = vadd.f32 0.0, %v746
        %v748 = vpop.f32.mrb[0].mxu0
        %v749 = vadd.f32 0.0, %v748
        %750 = vmatprep.mubr.bf16.mxu0 0
        %751 = vmatmul.mubr.bf16.gmra.mrb[0].mxu0 %v494
        %v752 = vpop.f32.mrb[0].mxu0
        %v753 = vadd.f32 0.0, %v752
        %v754 = vpop.f32.mrb[0].mxu0
        %v755 = vadd.f32 0.0, %v754
        %v756 = vpop.f32.mrb[0].mxu0
        %v757 = vadd.f32 0.0, %v756
        %v758 = vpop.f32.mrb[0].mxu0
        %v759 = vadd.f32 0.0, %v758
        %760 = vmatprep.mubr.bf16.mxu0 0
        %761 = vmatmul.mubr.bf16.gmra.mrb[0].mxu0 %v497
        %v762 = vpop.f32.mrb[0].mxu0
        %v763 = vadd.f32 0.0, %v762
        %v764 = vpop.f32.mrb[0].mxu0
        %v765 = vadd.f32 0.0, %v764
        %v766 = vpop.f32.mrb[0].mxu0
        %v767 = vadd.f32 0.0, %v766
        %v768 = vpop.f32.mrb[0].mxu0
        %v769 = vadd.f32 0.0, %v768
        %770 = vmatprep.mubr.bf16.mxu0 0
        %771 = vmatmul.mubr.bf16.gmra.mrb[0].mxu0 %v500
        %v772 = vpop.f32.mrb[0].mxu0
        %v773 = vadd.f32 0.0, %v772
        %v774 = vpop.f32.mrb[0].mxu0
        %v775 = vadd.f32 0.0, %v774
        %v776 = vpop.f32.mrb[0].mxu0
        %v777 = vadd.f32 0.0, %v776
        %v778 = vpop.f32.mrb[0].mxu0
        %v779 = vadd.f32 0.0, %v778
        %780 = vmatprep.mubr.bf16.mxu0 0
        %781 = vmatmul.mubr.bf16.gmra.mrb[0].mxu0 %v503
        %v782 = vpop.f32.mrb[0].mxu0
        %v783 = vadd.f32 0.0, %v782
        %v784 = vpop.f32.mrb[0].mxu0
        %v785 = vadd.f32 0.0, %v784
        %v786 = vpop.f32.mrb[0].mxu0
        %v787 = vadd.f32 0.0, %v786
        %v788 = vpop.f32.mrb[0].mxu0
        %v789 = vadd.f32 0.0, %v788
        %790 = vdwg.mxu0
        %791 = vmatprep.subr.bf16.mxu0 %v516
        %792 = vmatpush1.bf16.msra.mxu0 %v513
        %793 = vmatprep.subr.bf16.mxu0 0
        %794 = vmatpush1.bf16.msra.mxu0 0
        %795 = vmatprep.subr.bf16.mxu0 0
        %796 = vmatpush1.bf16.msra.mxu0 0
        %797 = vmatprep.subr.bf16.mxu0 0
        %798 = vmatpush1.bf16.msra.mxu0 0
        %799 = vmatprep.subr.bf16.mxu0 0
        %800 = vmatpush1.bf16.msra.mxu0 0
        %801 = vmatprep.subr.bf16.mxu0 0
        %802 = vmatpush1.bf16.msra.mxu0 0
        %803 = vmatprep.subr.bf16.mxu0 0
        %804 = vmatpush1.bf16.msra.mxu0 0
        %805 = vmatprep.subr.bf16.mxu0 0
        %806 = vmatpush1.bf16.msra.mxu0 0
        %807 = vmatprep.subr.bf16.mxu0 0
        %808 = vmatpush1.bf16.msra.mxu0 0
        %809 = vmatprep.subr.bf16.mxu0 0
        %810 = vmatpush1.bf16.msra.mxu0 0
        %811 = vmatprep.subr.bf16.mxu0 0
        %812 = vmatpush1.bf16.msra.mxu0 0
        %813 = vmatprep.subr.bf16.mxu0 0
        %814 = vmatpush1.bf16.msra.mxu0 0
        %815 = vmatprep.subr.bf16.mxu0 0
        %816 = vmatpush1.bf16.msra.mxu0 0
        %817 = vmatprep.subr.bf16.mxu0 0
        %818 = vmatpush1.bf16.msra.mxu0 0
        %819 = vmatprep.subr.bf16.mxu0 0
        %820 = vmatpush1.bf16.msra.mxu0 0
        %821 = vmatprep.subr.bf16.mxu0 0
        %822 = vmatpush1.bf16.msra.mxu0 0
        %823 = vmatprep.mubr.bf16.mxu0 0
        %824 = vmatmul.mubr.bf16.gmra.mrb[0].mxu0 %v434
        %v825 = vpop.f32.mrb[0].mxu0
        %v826 = vadd.f32 0.0, %v825
        %v827 = vpop.f32.mrb[0].mxu0
        %v828 = vadd.f32 0.0, %v827
        %v829 = vpop.f32.mrb[0].mxu0
        %v830 = vadd.f32 0.0, %v829
        %v831 = vpop.f32.mrb[0].mxu0
        %v832 = vadd.f32 0.0, %v831
        %833 = vmatprep.mubr.bf16.mxu0 0
        %834 = vmatmul.mubr.bf16.gmra.mrb[0].mxu0 %v437
        %v835 = vpop.f32.mrb[0].mxu0
        %v836 = vadd.f32 0.0, %v835
        %v837 = vpop.f32.mrb[0].mxu0
        %v838 = vadd.f32 0.0, %v837
        %v839 = vpop.f32.mrb[0].mxu0
        %v840 = vadd.f32 0.0, %v839
        %v841 = vpop.f32.mrb[0].mxu0
        %v842 = vadd.f32 0.0, %v841
        %843 = vmatprep.mubr.bf16.mxu0 0
        %844 = vmatmul.mubr.bf16.gmra.mrb[0].mxu0 %v440
        %v845 = vpop.f32.mrb[0].mxu0
        %v846 = vadd.f32 0.0, %v845
        %v847 = vpop.f32.mrb[0].mxu0
        %v848 = vadd.f32 0.0, %v847
        %v849 = vpop.f32.mrb[0].mxu0
        %v850 = vadd.f32 0.0, %v849
        %v851 = vpop.f32.mrb[0].mxu0
        %v852 = vadd.f32 0.0, %v851
        %853 = vmatprep.mubr.bf16.mxu0 0
        %854 = vmatmul.mubr.bf16.gmra.mrb[0].mxu0 %v443
        %v855 = vpop.f32.mrb[0].mxu0
        %v856 = vadd.f32 0.0, %v855
        %v857 = vpop.f32.mrb[0].mxu0
        %v858 = vadd.f32 0.0, %v857
        %v859 = vpop.f32.mrb[0].mxu0
        %v860 = vadd.f32 0.0, %v859
        %v861 = vpop.f32.mrb[0].mxu0
        %v862 = vadd.f32 0.0, %v861
        %863 = vmatprep.mubr.bf16.mxu0 0
        %864 = vmatmul.mubr.bf16.gmra.mrb[0].mxu0 %v446
        %v865 = vpop.f32.mrb[0].mxu0
        %v866 = vadd.f32 0.0, %v865
        %v867 = vpop.f32.mrb[0].mxu0
        %v868 = vadd.f32 0.0, %v867
        %v869 = vpop.f32.mrb[0].mxu0
        %v870 = vadd.f32 0.0, %v869
        %v871 = vpop.f32.mrb[0].mxu0
        %v872 = vadd.f32 0.0, %v871
        %873 = vmatprep.mubr.bf16.mxu0 0
        %874 = vmatmul.mubr.bf16.gmra.mrb[0].mxu0 %v449
        %v875 = vpop.f32.mrb[0].mxu0
        %v876 = vadd.f32 0.0, %v875
        %v877 = vpop.f32.mrb[0].mxu0
        %v878 = vadd.f32 0.0, %v877
        %v879 = vpop.f32.mrb[0].mxu0
        %v880 = vadd.f32 0.0, %v879
        %v881 = vpop.f32.mrb[0].mxu0
        %v882 = vadd.f32 0.0, %v881
        %883 = vmatprep.mubr.bf16.mxu0 0
        %884 = vmatmul.mubr.bf16.gmra.mrb[0].mxu0 %v452
        %v885 = vpop.f32.mrb[0].mxu0
        %v886 = vadd.f32 0.0, %v885
        %v887 = vpop.f32.mrb[0].mxu0
        %v888 = vadd.f32 0.0, %v887
        %v889 = vpop.f32.mrb[0].mxu0
        %v890 = vadd.f32 0.0, %v889
        %v891 = vpop.f32.mrb[0].mxu0
        %v892 = vadd.f32 0.0, %v891
        %893 = vmatprep.mubr.bf16.mxu0 0
        %894 = vmatmul.mubr.bf16.gmra.mrb[0].mxu0 %v455
        %v895 = vpop.f32.mrb[0].mxu0
        %v896 = vadd.f32 0.0, %v895
        %v897 = vpop.f32.mrb[0].mxu0
        %v898 = vadd.f32 0.0, %v897
        %v899 = vpop.f32.mrb[0].mxu0
        %v900 = vadd.f32 0.0, %v899
        %v901 = vpop.f32.mrb[0].mxu0
        %v902 = vadd.f32 0.0, %v901
        %903 = vmatprep.mubr.bf16.mxu0 0
        %904 = vmatmul.mubr.bf16.gmra.mrb[0].mxu0 %v458
        %v905 = vpop.f32.mrb[0].mxu0
        %v906 = vadd.f32 0.0, %v905
        %v907 = vpop.f32.mrb[0].mxu0
        %v908 = vadd.f32 0.0, %v907
        %v909 = vpop.f32.mrb[0].mxu0
        %v910 = vadd.f32 0.0, %v909
        %v911 = vpop.f32.mrb[0].mxu0
        %v912 = vadd.f32 0.0, %v911
        %913 = vmatprep.mubr.bf16.mxu0 0
        %914 = vmatmul.mubr.bf16.gmra.mrb[0].mxu0 %v461
        %v915 = vpop.f32.mrb[0].mxu0
        %v916 = vadd.f32 0.0, %v915
        %v917 = vpop.f32.mrb[0].mxu0
        %v918 = vadd.f32 0.0, %v917
        %v919 = vpop.f32.mrb[0].mxu0
        %v920 = vadd.f32 0.0, %v919
        %v921 = vpop.f32.mrb[0].mxu0
        %v922 = vadd.f32 0.0, %v921
        %923 = vmatprep.mubr.bf16.mxu0 0
        %924 = vmatmul.mubr.bf16.gmra.mrb[0].mxu0 %v464
        %v925 = vpop.f32.mrb[0].mxu0
        %v926 = vadd.f32 0.0, %v925
        %v927 = vpop.f32.mrb[0].mxu0
        %v928 = vadd.f32 0.0, %v927
        %v929 = vpop.f32.mrb[0].mxu0
        %v930 = vadd.f32 0.0, %v929
        %v931 = vpop.f32.mrb[0].mxu0
        %v932 = vadd.f32 0.0, %v931
        %933 = vmatprep.mubr.bf16.mxu0 0
        %934 = vmatmul.mubr.bf16.gmra.mrb[0].mxu0 %v467
        %v935 = vpop.f32.mrb[0].mxu0
        %v936 = vadd.f32 0.0, %v935
        %v937 = vpop.f32.mrb[0].mxu0
        %v938 = vadd.f32 0.0, %v937
        %v939 = vpop.f32.mrb[0].mxu0
        %v940 = vadd.f32 0.0, %v939
        %v941 = vpop.f32.mrb[0].mxu0
        %v942 = vadd.f32 0.0, %v941
        %943 = vmatprep.mubr.bf16.mxu0 0
        %944 = vmatmul.mubr.bf16.gmra.mrb[0].mxu0 %v470
        %v945 = vpop.f32.mrb[0].mxu0
        %v946 = vadd.f32 0.0, %v945
        %v947 = vpop.f32.mrb[0].mxu0
        %v948 = vadd.f32 0.0, %v947
        %v949 = vpop.f32.mrb[0].mxu0
        %v950 = vadd.f32 0.0, %v949
        %v951 = vpop.f32.mrb[0].mxu0
        %v952 = vadd.f32 0.0, %v951
        %953 = vmatprep.mubr.bf16.mxu0 0
        %954 = vmatmul.mubr.bf16.gmra.mrb[0].mxu0 %v473
        %v955 = vpop.f32.mrb[0].mxu0
        %v956 = vadd.f32 0.0, %v955
        %v957 = vpop.f32.mrb[0].mxu0
        %v958 = vadd.f32 0.0, %v957
        %v959 = vpop.f32.mrb[0].mxu0
        %v960 = vadd.f32 0.0, %v959
        %v961 = vpop.f32.mrb[0].mxu0
        %v962 = vadd.f32 0.0, %v961
        %963 = vmatprep.mubr.bf16.mxu0 0
        %964 = vmatmul.mubr.bf16.gmra.mrb[0].mxu0 %v476
        %v965 = vpop.f32.mrb[0].mxu0
        %v966 = vadd.f32 0.0, %v965
        %v967 = vpop.f32.mrb[0].mxu0
        %v968 = vadd.f32 0.0, %v967
        %v969 = vpop.f32.mrb[0].mxu0
        %v970 = vadd.f32 0.0, %v969
        %v971 = vpop.f32.mrb[0].mxu0
        %v972 = vadd.f32 0.0, %v971
        %973 = vmatprep.mubr.bf16.mxu0 0
        %974 = vmatmul.mubr.bf16.gmra.mrb[0].mxu0 %v479
        %v975 = vpop.f32.mrb[0].mxu0
        %v976 = vadd.f32 0.0, %v975
        %v977 = vpop.f32.mrb[0].mxu0
        %v978 = vadd.f32 0.0, %v977
        %v979 = vpop.f32.mrb[0].mxu0
        %v980 = vadd.f32 0.0, %v979
        %v981 = vpop.f32.mrb[0].mxu0
        %v982 = vadd.f32 0.0, %v981
        %983 = vmatprep.mubr.bf16.mxu0 0
        %984 = vmatmul.mubr.bf16.gmra.mrb[0].mxu0 %v482
        %v985 = vpop.f32.mrb[0].mxu0
        %v986 = vadd.f32 0.0, %v985
        %v987 = vpop.f32.mrb[0].mxu0
        %v988 = vadd.f32 0.0, %v987
        %v989 = vpop.f32.mrb[0].mxu0
        %v990 = vadd.f32 0.0, %v989
        %v991 = vpop.f32.mrb[0].mxu0
        %v992 = vadd.f32 0.0, %v991
        %993 = vmatprep.mubr.bf16.mxu0 0
        %994 = vmatmul.mubr.bf16.gmra.mrb[0].mxu0 %v485
        %v995 = vpop.f32.mrb[0].mxu0
        %v996 = vadd.f32 0.0, %v995
        %v997 = vpop.f32.mrb[0].mxu0
        %v998 = vadd.f32 0.0, %v997
        %v999 = vpop.f32.mrb[0].mxu0
        %v1000 = vadd.f32 0.0, %v999
        %v1001 = vpop.f32.mrb[0].mxu0
        %v1002 = vadd.f32 0.0, %v1001
        %1003 = vmatprep.mubr.bf16.mxu0 0
        %1004 = vmatmul.mubr.bf16.gmra.mrb[0].mxu0 %v488
        %v1005 = vpop.f32.mrb[0].mxu0
        %v1006 = vadd.f32 0.0, %v1005
        %v1007 = vpop.f32.mrb[0].mxu0
        %v1008 = vadd.f32 0.0, %v1007
        %v1009 = vpop.f32.mrb[0].mxu0
        %v1010 = vadd.f32 0.0, %v1009
        %v1011 = vpop.f32.mrb[0].mxu0
        %v1012 = vadd.f32 0.0, %v1011
        %1013 = vmatprep.mubr.bf16.mxu0 0
        %1014 = vmatmul.mubr.bf16.gmra.mrb[0].mxu0 %v491
        %v1015 = vpop.f32.mrb[0].mxu0
        %v1016 = vadd.f32 0.0, %v1015
        %v1017 = vpop.f32.mrb[0].mxu0
        %v1018 = vadd.f32 0.0, %v1017
        %v1019 = vpop.f32.mrb[0].mxu0
        %v1020 = vadd.f32 0.0, %v1019
        %v1021 = vpop.f32.mrb[0].mxu0
        %v1022 = vadd.f32 0.0, %v1021
        %1023 = vmatprep.mubr.bf16.mxu0 0
        %1024 = vmatmul.mubr.bf16.gmra.mrb[0].mxu0 %v494
        %v1025 = vpop.f32.mrb[0].mxu0
        %v1026 = vadd.f32 0.0, %v1025
        %v1027 = vpop.f32.mrb[0].mxu0
        %v1028 = vadd.f32 0.0, %v1027
        %v1029 = vpop.f32.mrb[0].mxu0
        %v1030 = vadd.f32 0.0, %v1029
        %v1031 = vpop.f32.mrb[0].mxu0
        %v1032 = vadd.f32 0.0, %v1031
        %1033 = vmatprep.mubr.bf16.mxu0 0
        %1034 = vmatmul.mubr.bf16.gmra.mrb[0].mxu0 %v497
        %v1035 = vpop.f32.mrb[0].mxu0
        %v1036 = vadd.f32 0.0, %v1035
        %v1037 = vpop.f32.mrb[0].mxu0
        %v1038 = vadd.f32 0.0, %v1037
        %v1039 = vpop.f32.mrb[0].mxu0
        %v1040 = vadd.f32 0.0, %v1039
        %v1041 = vpop.f32.mrb[0].mxu0
        %v1042 = vadd.f32 0.0, %v1041
        %1043 = vmatprep.mubr.bf16.mxu0 0
        %1044 = vmatmul.mubr.bf16.gmra.mrb[0].mxu0 %v500
        %v1045 = vpop.f32.mrb[0].mxu0
        %v1046 = vadd.f32 0.0, %v1045
        %v1047 = vpop.f32.mrb[0].mxu0
        %v1048 = vadd.f32 0.0, %v1047
        %v1049 = vpop.f32.mrb[0].mxu0
        %v1050 = vadd.f32 0.0, %v1049
        %v1051 = vpop.f32.mrb[0].mxu0
        %v1052 = vadd.f32 0.0, %v1051
        %1053 = vmatprep.mubr.bf16.mxu0 0
        %1054 = vmatmul.mubr.bf16.gmra.mrb[0].mxu0 %v503
        %v1055 = vpop.f32.mrb[0].mxu0
        %v1056 = vadd.f32 0.0, %v1055
        %v1057 = vpop.f32.mrb[0].mxu0
        %v1058 = vadd.f32 0.0, %v1057
        %v1059 = vpop.f32.mrb[0].mxu0
        %v1060 = vadd.f32 0.0, %v1059
        %v1061 = vpop.f32.mrb[0].mxu0
        %v1062 = vadd.f32 0.0, %v1061
        %1063 = vdwg.mxu0
        %v1064 = vpack.c.bf16 %v557, %v553
        %v1065 = vpack.c.bf16 %v559, %v555
        %v1066 = vpack.c.bf16 %v830, %v826
        %v1067 = vpack.c.bf16 %v832, %v828
        %v1068 = vpack.c.bf16 %v567, %v563
        %v1069 = vpack.c.bf16 %v569, %v565
        %v1070 = vpack.c.bf16 %v840, %v836
        %v1071 = vpack.c.bf16 %v842, %v838
        %v1072 = vpack.c.bf16 %v577, %v573
        %v1073 = vpack.c.bf16 %v579, %v575
        %v1074 = vpack.c.bf16 %v850, %v846
        %v1075 = vpack.c.bf16 %v852, %v848
        %v1076 = vpack.c.bf16 %v587, %v583
        %v1077 = vpack.c.bf16 %v589, %v585
        %v1078 = vpack.c.bf16 %v860, %v856
        %v1079 = vpack.c.bf16 %v862, %v858
        %v1080 = vpack.c.bf16 %v597, %v593
        %v1081 = vpack.c.bf16 %v599, %v595
        %v1082 = vpack.c.bf16 %v870, %v866
        %v1083 = vpack.c.bf16 %v872, %v868
        %v1084 = vpack.c.bf16 %v607, %v603
        %v1085 = vpack.c.bf16 %v609, %v605
        %v1086 = vpack.c.bf16 %v880, %v876
        %v1087 = vpack.c.bf16 %v882, %v878
        %v1088 = vpack.c.bf16 %v617, %v613
        %v1089 = vpack.c.bf16 %v619, %v615
        %v1090 = vpack.c.bf16 %v890, %v886
        %v1091 = vpack.c.bf16 %v892, %v888
        %v1092 = vpack.c.bf16 %v627, %v623
        %v1093 = vpack.c.bf16 %v629, %v625
        %v1094 = vpack.c.bf16 %v900, %v896
        %v1095 = vpack.c.bf16 %v902, %v898
        %v1128 = vunpack.c.l.b16 %v1064
        %v1129 = vunpack.c.l.b16 %v1065
        %v1130 = vunpack.c.l.b16 %v1066
        %v1131 = vunpack.c.l.b16 %v1067
        %v1132 = vunpack.c.h.b16 %v1064
        %v1133 = vunpack.c.h.b16 %v1065
        %v1134 = vunpack.c.h.b16 %v1066
        %v1135 = vunpack.c.h.b16 %v1067
        %v1136 = vunpack.c.l.b16 %v1068
        %v1137 = vunpack.c.l.b16 %v1069
        %v1138 = vunpack.c.l.b16 %v1070
        %v1139 = vunpack.c.l.b16 %v1071
        %v1140 = vunpack.c.h.b16 %v1068
        %v1141 = vunpack.c.h.b16 %v1069
        %v1142 = vunpack.c.h.b16 %v1070
        %v1143 = vunpack.c.h.b16 %v1071
        %v1144 = vunpack.c.l.b16 %v1072
        %v1145 = vunpack.c.l.b16 %v1073
        %v1146 = vunpack.c.l.b16 %v1074
        %v1147 = vunpack.c.l.b16 %v1075
        %v1148 = vunpack.c.h.b16 %v1072
        %v1149 = vunpack.c.h.b16 %v1073
        %v1150 = vunpack.c.h.b16 %v1074
        %v1151 = vunpack.c.h.b16 %v1075
        %v1152 = vunpack.c.l.b16 %v1076
        %v1153 = vunpack.c.l.b16 %v1077
        %v1154 = vunpack.c.l.b16 %v1078
        %v1155 = vunpack.c.l.b16 %v1079
        %v1156 = vunpack.c.h.b16 %v1076
        %v1157 = vunpack.c.h.b16 %v1077
        %v1158 = vunpack.c.h.b16 %v1078
        %v1159 = vunpack.c.h.b16 %v1079
        %v1160 = vunpack.c.l.b16 %v1080
        %v1161 = vunpack.c.l.b16 %v1081
        %v1162 = vunpack.c.l.b16 %v1082
        %v1163 = vunpack.c.l.b16 %v1083
        %v1164 = vunpack.c.h.b16 %v1080
        %v1165 = vunpack.c.h.b16 %v1081
        %v1166 = vunpack.c.h.b16 %v1082
        %v1167 = vunpack.c.h.b16 %v1083
        %v1168 = vunpack.c.l.b16 %v1084
        %v1169 = vunpack.c.l.b16 %v1085
        %v1170 = vunpack.c.l.b16 %v1086
        %v1171 = vunpack.c.l.b16 %v1087
        %v1172 = vunpack.c.h.b16 %v1084
        %v1173 = vunpack.c.h.b16 %v1085
        %v1174 = vunpack.c.h.b16 %v1086
        %v1175 = vunpack.c.h.b16 %v1087
        %v1176 = vunpack.c.l.b16 %v1088
        %v1177 = vunpack.c.l.b16 %v1089
        %v1178 = vunpack.c.l.b16 %v1090
        %v1179 = vunpack.c.l.b16 %v1091
        %v1180 = vunpack.c.h.b16 %v1088
        %v1181 = vunpack.c.h.b16 %v1089
        %v1182 = vunpack.c.h.b16 %v1090
        %v1183 = vunpack.c.h.b16 %v1091
        %v1184 = vunpack.c.l.b16 %v1092
        %v1185 = vunpack.c.l.b16 %v1093
        %v1186 = vunpack.c.l.b16 %v1094
        %v1187 = vunpack.c.l.b16 %v1095
        %v1188 = vunpack.c.h.b16 %v1092
        %v1189 = vunpack.c.h.b16 %v1093
        %v1190 = vunpack.c.h.b16 %v1094
        %v1191 = vunpack.c.h.b16 %v1095
        %v1192 = vpack.c.b16 %v1129, %v1128
        %v1193 = vpack.c.b16 %v1131, %v1130
        %v1194 = vpack.c.b16 %v1133, %v1132
        %v1195 = vpack.c.b16 %v1135, %v1134
        %v1196 = vpack.c.b16 %v1137, %v1136
        %v1197 = vpack.c.b16 %v1139, %v1138
        %v1198 = vpack.c.b16 %v1141, %v1140
        %v1199 = vpack.c.b16 %v1143, %v1142
        %v1200 = vpack.c.b16 %v1145, %v1144
        %v1201 = vpack.c.b16 %v1147, %v1146
        %v1202 = vpack.c.b16 %v1149, %v1148
        %v1203 = vpack.c.b16 %v1151, %v1150
        %v1204 = vpack.c.b16 %v1153, %v1152
        %v1205 = vpack.c.b16 %v1155, %v1154
        %v1206 = vpack.c.b16 %v1157, %v1156
        %v1207 = vpack.c.b16 %v1159, %v1158
        %v1208 = vpack.c.b16 %v1161, %v1160
        %v1209 = vpack.c.b16 %v1163, %v1162
        %v1210 = vpack.c.b16 %v1165, %v1164
        %v1211 = vpack.c.b16 %v1167, %v1166
        %v1212 = vpack.c.b16 %v1169, %v1168
        %v1213 = vpack.c.b16 %v1171, %v1170
        %v1214 = vpack.c.b16 %v1173, %v1172
        %v1215 = vpack.c.b16 %v1175, %v1174
        %v1216 = vpack.c.b16 %v1177, %v1176
        %v1217 = vpack.c.b16 %v1179, %v1178
        %v1218 = vpack.c.b16 %v1181, %v1180
        %v1219 = vpack.c.b16 %v1183, %v1182
        %v1220 = vpack.c.b16 %v1185, %v1184
        %v1221 = vpack.c.b16 %v1187, %v1186
        %v1222 = vpack.c.b16 %v1189, %v1188
        %v1223 = vpack.c.b16 %v1191, %v1190
        %1256 = vst [vmem:[%s223] sm:$0xff] %v1192
        %1257 = vst [vmem:[%s223 + $0x8] sm:$0xff] %v1193
        %1258 = vst [vmem:[%s223 + $0x10] sm:$0xff] %v1194
        %1259 = vst [vmem:[%s223 + $0x18] sm:$0xff] %v1195
        %1260 = vst [vmem:[%s223 + $0x20] sm:$0xff] %v1196
        %1261 = vst [vmem:[%s223 + $0x28] sm:$0xff] %v1197
        %1262 = vst [vmem:[%s223 + $0x30] sm:$0xff] %v1198
        %1263 = vst [vmem:[%s223 + $0x38] sm:$0xff] %v1199
        %1264 = vst [vmem:[%s223 + $0x40] sm:$0xff] %v1200
        %1265 = vst [vmem:[%s223 + $0x48] sm:$0xff] %v1201
        %1266 = vst [vmem:[%s223 + $0x50] sm:$0xff] %v1202
        %1267 = vst [vmem:[%s223 + $0x58] sm:$0xff] %v1203
        %1268 = vst [vmem:[%s223 + $0x60] sm:$0xff] %v1204
        %1269 = vst [vmem:[%s223 + $0x68] sm:$0xff] %v1205
        %1270 = vst [vmem:[%s223 + $0x70] sm:$0xff] %v1206
        %1271 = vst [vmem:[%s223 + $0x78] sm:$0xff] %v1207
        %1272 = vst [vmem:[%s223 + $0x80] sm:$0xff] %v1208
        %1273 = vst [vmem:[%s223 + $0x88] sm:$0xff] %v1209
        %1274 = vst [vmem:[%s223 + $0x90] sm:$0xff] %v1210
        %1275 = vst [vmem:[%s223 + $0x98] sm:$0xff] %v1211
        %1276 = vst [vmem:[%s223 + $0xa0] sm:$0xff] %v1212
        %1277 = vst [vmem:[%s223 + $0xa8] sm:$0xff] %v1213
        %1278 = vst [vmem:[%s223 + $0xb0] sm:$0xff] %v1214
        %1279 = vst [vmem:[%s223 + $0xb8] sm:$0xff] %v1215
        %1280 = vst [vmem:[%s223 + $0xc0] sm:$0xff] %v1216
        %1281 = vst [vmem:[%s223 + $0xc8] sm:$0xff] %v1217
        %1282 = vst [vmem:[%s223 + $0xd0] sm:$0xff] %v1218
        %1283 = vst [vmem:[%s223 + $0xd8] sm:$0xff] %v1219
        %1284 = vst [vmem:[%s223 + $0xe0] sm:$0xff] %v1220
        %1285 = vst [vmem:[%s223 + $0xe8] sm:$0xff] %v1221
        %1286 = vst [vmem:[%s223 + $0xf0] sm:$0xff] %v1222
        %1287 = vst [vmem:[%s223 + $0xf8] sm:$0xff] %v1223
        %v1288 = vpack.c.bf16 %v637, %v633
        %v1289 = vpack.c.bf16 %v639, %v635
        %v1290 = vpack.c.bf16 %v910, %v906
        %v1291 = vpack.c.bf16 %v912, %v908
        %v1292 = vpack.c.bf16 %v647, %v643
        %v1293 = vpack.c.bf16 %v649, %v645
        %v1294 = vpack.c.bf16 %v920, %v916
        %v1295 = vpack.c.bf16 %v922, %v918
        %v1296 = vpack.c.bf16 %v657, %v653
        %v1297 = vpack.c.bf16 %v659, %v655
        %v1298 = vpack.c.bf16 %v930, %v926
        %v1299 = vpack.c.bf16 %v932, %v928
        %v1300 = vpack.c.bf16 %v667, %v663
        %v1301 = vpack.c.bf16 %v669, %v665
        %v1302 = vpack.c.bf16 %v940, %v936
        %v1303 = vpack.c.bf16 %v942, %v938
        %v1304 = vpack.c.bf16 %v677, %v673
        %v1305 = vpack.c.bf16 %v679, %v675
        %v1306 = vpack.c.bf16 %v950, %v946
        %v1307 = vpack.c.bf16 %v952, %v948
        %v1308 = vpack.c.bf16 %v687, %v683
        %v1309 = vpack.c.bf16 %v689, %v685
        %v1310 = vpack.c.bf16 %v960, %v956
        %v1311 = vpack.c.bf16 %v962, %v958
        %v1312 = vpack.c.bf16 %v697, %v693
        %v1313 = vpack.c.bf16 %v699, %v695
        %v1314 = vpack.c.bf16 %v970, %v966
        %v1315 = vpack.c.bf16 %v972, %v968
        %v1316 = vpack.c.bf16 %v707, %v703
        %v1317 = vpack.c.bf16 %v709, %v705
        %v1318 = vpack.c.bf16 %v980, %v976
        %v1319 = vpack.c.bf16 %v982, %v978
        %v1352 = vunpack.c.l.b16 %v1288
        %v1353 = vunpack.c.l.b16 %v1289
        %v1354 = vunpack.c.l.b16 %v1290
        %v1355 = vunpack.c.l.b16 %v1291
        %v1356 = vunpack.c.h.b16 %v1288
        %v1357 = vunpack.c.h.b16 %v1289
        %v1358 = vunpack.c.h.b16 %v1290
        %v1359 = vunpack.c.h.b16 %v1291
        %v1360 = vunpack.c.l.b16 %v1292
        %v1361 = vunpack.c.l.b16 %v1293
        %v1362 = vunpack.c.l.b16 %v1294
        %v1363 = vunpack.c.l.b16 %v1295
        %v1364 = vunpack.c.h.b16 %v1292
        %v1365 = vunpack.c.h.b16 %v1293
        %v1366 = vunpack.c.h.b16 %v1294
        %v1367 = vunpack.c.h.b16 %v1295
        %v1368 = vunpack.c.l.b16 %v1296
        %v1369 = vunpack.c.l.b16 %v1297
        %v1370 = vunpack.c.l.b16 %v1298
        %v1371 = vunpack.c.l.b16 %v1299
        %v1372 = vunpack.c.h.b16 %v1296
        %v1373 = vunpack.c.h.b16 %v1297
        %v1374 = vunpack.c.h.b16 %v1298
        %v1375 = vunpack.c.h.b16 %v1299
        %v1376 = vunpack.c.l.b16 %v1300
        %v1377 = vunpack.c.l.b16 %v1301
        %v1378 = vunpack.c.l.b16 %v1302
        %v1379 = vunpack.c.l.b16 %v1303
        %v1380 = vunpack.c.h.b16 %v1300
        %v1381 = vunpack.c.h.b16 %v1301
        %v1382 = vunpack.c.h.b16 %v1302
        %v1383 = vunpack.c.h.b16 %v1303
        %v1384 = vunpack.c.l.b16 %v1304
        %v1385 = vunpack.c.l.b16 %v1305
        %v1386 = vunpack.c.l.b16 %v1306
        %v1387 = vunpack.c.l.b16 %v1307
        %v1388 = vunpack.c.h.b16 %v1304
        %v1389 = vunpack.c.h.b16 %v1305
        %v1390 = vunpack.c.h.b16 %v1306
        %v1391 = vunpack.c.h.b16 %v1307
        %v1392 = vunpack.c.l.b16 %v1308
        %v1393 = vunpack.c.l.b16 %v1309
        %v1394 = vunpack.c.l.b16 %v1310
        %v1395 = vunpack.c.l.b16 %v1311
        %v1396 = vunpack.c.h.b16 %v1308
        %v1397 = vunpack.c.h.b16 %v1309
        %v1398 = vunpack.c.h.b16 %v1310
        %v1399 = vunpack.c.h.b16 %v1311
        %v1400 = vunpack.c.l.b16 %v1312
        %v1401 = vunpack.c.l.b16 %v1313
        %v1402 = vunpack.c.l.b16 %v1314
        %v1403 = vunpack.c.l.b16 %v1315
        %v1404 = vunpack.c.h.b16 %v1312
        %v1405 = vunpack.c.h.b16 %v1313
        %v1406 = vunpack.c.h.b16 %v1314
        %v1407 = vunpack.c.h.b16 %v1315
        %v1408 = vunpack.c.l.b16 %v1316
        %v1409 = vunpack.c.l.b16 %v1317
        %v1410 = vunpack.c.l.b16 %v1318
        %v1411 = vunpack.c.l.b16 %v1319
        %v1412 = vunpack.c.h.b16 %v1316
        %v1413 = vunpack.c.h.b16 %v1317
        %v1414 = vunpack.c.h.b16 %v1318
        %v1415 = vunpack.c.h.b16 %v1319
        %v1416 = vpack.c.b16 %v1353, %v1352
        %v1417 = vpack.c.b16 %v1355, %v1354
        %v1418 = vpack.c.b16 %v1357, %v1356
        %v1419 = vpack.c.b16 %v1359, %v1358
        %v1420 = vpack.c.b16 %v1361, %v1360
        %v1421 = vpack.c.b16 %v1363, %v1362
        %v1422 = vpack.c.b16 %v1365, %v1364
        %v1423 = vpack.c.b16 %v1367, %v1366
        %v1424 = vpack.c.b16 %v1369, %v1368
        %v1425 = vpack.c.b16 %v1371, %v1370
        %v1426 = vpack.c.b16 %v1373, %v1372
        %v1427 = vpack.c.b16 %v1375, %v1374
        %v1428 = vpack.c.b16 %v1377, %v1376
        %v1429 = vpack.c.b16 %v1379, %v1378
        %v1430 = vpack.c.b16 %v1381, %v1380
        %v1431 = vpack.c.b16 %v1383, %v1382
        %v1432 = vpack.c.b16 %v1385, %v1384
        %v1433 = vpack.c.b16 %v1387, %v1386
        %v1434 = vpack.c.b16 %v1389, %v1388
        %v1435 = vpack.c.b16 %v1391, %v1390
        %v1436 = vpack.c.b16 %v1393, %v1392
        %v1437 = vpack.c.b16 %v1395, %v1394
        %v1438 = vpack.c.b16 %v1397, %v1396
        %v1439 = vpack.c.b16 %v1399, %v1398
        %v1440 = vpack.c.b16 %v1401, %v1400
        %v1441 = vpack.c.b16 %v1403, %v1402
        %v1442 = vpack.c.b16 %v1405, %v1404
        %v1443 = vpack.c.b16 %v1407, %v1406
        %v1444 = vpack.c.b16 %v1409, %v1408
        %v1445 = vpack.c.b16 %v1411, %v1410
        %v1446 = vpack.c.b16 %v1413, %v1412
        %v1447 = vpack.c.b16 %v1415, %v1414
        %1480 = vst [vmem:[%s230] sm:$0xff] %v1416
        %1481 = vst [vmem:[%s230 + $0x8] sm:$0xff] %v1417
        %1482 = vst [vmem:[%s230 + $0x10] sm:$0xff] %v1418
        %1483 = vst [vmem:[%s230 + $0x18] sm:$0xff] %v1419
        %1484 = vst [vmem:[%s230 + $0x20] sm:$0xff] %v1420
        %1485 = vst [vmem:[%s230 + $0x28] sm:$0xff] %v1421
        %1486 = vst [vmem:[%s230 + $0x30] sm:$0xff] %v1422
        %1487 = vst [vmem:[%s230 + $0x38] sm:$0xff] %v1423
        %1488 = vst [vmem:[%s230 + $0x40] sm:$0xff] %v1424
        %1489 = vst [vmem:[%s230 + $0x48] sm:$0xff] %v1425
        %1490 = vst [vmem:[%s230 + $0x50] sm:$0xff] %v1426
        %1491 = vst [vmem:[%s230 + $0x58] sm:$0xff] %v1427
        %1492 = vst [vmem:[%s230 + $0x60] sm:$0xff] %v1428
        %1493 = vst [vmem:[%s230 + $0x68] sm:$0xff] %v1429
        %1494 = vst [vmem:[%s230 + $0x70] sm:$0xff] %v1430
        %1495 = vst [vmem:[%s230 + $0x78] sm:$0xff] %v1431
        %1496 = vst [vmem:[%s230 + $0x80] sm:$0xff] %v1432
        %1497 = vst [vmem:[%s230 + $0x88] sm:$0xff] %v1433
        %1498 = vst [vmem:[%s230 + $0x90] sm:$0xff] %v1434
        %1499 = vst [vmem:[%s230 + $0x98] sm:$0xff] %v1435
        %1500 = vst [vmem:[%s230 + $0xa0] sm:$0xff] %v1436
        %1501 = vst [vmem:[%s230 + $0xa8] sm:$0xff] %v1437
        %1502 = vst [vmem:[%s230 + $0xb0] sm:$0xff] %v1438
        %1503 = vst [vmem:[%s230 + $0xb8] sm:$0xff] %v1439
        %1504 = vst [vmem:[%s230 + $0xc0] sm:$0xff] %v1440
        %1505 = vst [vmem:[%s230 + $0xc8] sm:$0xff] %v1441
        %1506 = vst [vmem:[%s230 + $0xd0] sm:$0xff] %v1442
        %1507 = vst [vmem:[%s230 + $0xd8] sm:$0xff] %v1443
        %1508 = vst [vmem:[%s230 + $0xe0] sm:$0xff] %v1444
        %1509 = vst [vmem:[%s230 + $0xe8] sm:$0xff] %v1445
        %1510 = vst [vmem:[%s230 + $0xf0] sm:$0xff] %v1446
        %1511 = vst [vmem:[%s230 + $0xf8] sm:$0xff] %v1447
        %v1512 = vpack.c.bf16 %v717, %v713
        %v1513 = vpack.c.bf16 %v719, %v715
        %v1514 = vpack.c.bf16 %v990, %v986
        %v1515 = vpack.c.bf16 %v992, %v988
        %v1516 = vpack.c.bf16 %v727, %v723
        %v1517 = vpack.c.bf16 %v729, %v725
        %v1518 = vpack.c.bf16 %v1000, %v996
        %v1519 = vpack.c.bf16 %v1002, %v998
        %v1520 = vpack.c.bf16 %v737, %v733
        %v1521 = vpack.c.bf16 %v739, %v735
        %v1522 = vpack.c.bf16 %v1010, %v1006
        %v1523 = vpack.c.bf16 %v1012, %v1008
        %v1524 = vpack.c.bf16 %v747, %v743
        %v1525 = vpack.c.bf16 %v749, %v745
        %v1526 = vpack.c.bf16 %v1020, %v1016
        %v1527 = vpack.c.bf16 %v1022, %v1018
        %v1528 = vpack.c.bf16 %v757, %v753
        %v1529 = vpack.c.bf16 %v759, %v755
        %v1530 = vpack.c.bf16 %v1030, %v1026
        %v1531 = vpack.c.bf16 %v1032, %v1028
        %v1532 = vpack.c.bf16 %v767, %v763
        %v1533 = vpack.c.bf16 %v769, %v765
        %v1534 = vpack.c.bf16 %v1040, %v1036
        %v1535 = vpack.c.bf16 %v1042, %v1038
        %v1536 = vpack.c.bf16 %v777, %v773
        %v1537 = vpack.c.bf16 %v779, %v775
        %v1538 = vpack.c.bf16 %v1050, %v1046
        %v1539 = vpack.c.bf16 %v1052, %v1048
        %v1540 = vpack.c.bf16 %v787, %v783
        %v1541 = vpack.c.bf16 %v789, %v785
        %v1542 = vpack.c.bf16 %v1060, %v1056
        %v1543 = vpack.c.bf16 %v1062, %v1058
        %v1576 = vunpack.c.l.b16 %v1512
        %v1577 = vunpack.c.l.b16 %v1513
        %v1578 = vunpack.c.l.b16 %v1514
        %v1579 = vunpack.c.l.b16 %v1515
        %v1580 = vunpack.c.h.b16 %v1512
        %v1581 = vunpack.c.h.b16 %v1513
        %v1582 = vunpack.c.h.b16 %v1514
        %v1583 = vunpack.c.h.b16 %v1515
        %v1584 = vunpack.c.l.b16 %v1516
        %v1585 = vunpack.c.l.b16 %v1517
        %v1586 = vunpack.c.l.b16 %v1518
        %v1587 = vunpack.c.l.b16 %v1519
        %v1588 = vunpack.c.h.b16 %v1516
        %v1589 = vunpack.c.h.b16 %v1517
        %v1590 = vunpack.c.h.b16 %v1518
        %v1591 = vunpack.c.h.b16 %v1519
        %v1592 = vunpack.c.l.b16 %v1520
        %v1593 = vunpack.c.l.b16 %v1521
        %v1594 = vunpack.c.l.b16 %v1522
        %v1595 = vunpack.c.l.b16 %v1523
        %v1596 = vunpack.c.h.b16 %v1520
        %v1597 = vunpack.c.h.b16 %v1521
        %v1598 = vunpack.c.h.b16 %v1522
        %v1599 = vunpack.c.h.b16 %v1523
        %v1600 = vunpack.c.l.b16 %v1524
        %v1601 = vunpack.c.l.b16 %v1525
        %v1602 = vunpack.c.l.b16 %v1526
        %v1603 = vunpack.c.l.b16 %v1527
        %v1604 = vunpack.c.h.b16 %v1524
        %v1605 = vunpack.c.h.b16 %v1525
        %v1606 = vunpack.c.h.b16 %v1526
        %v1607 = vunpack.c.h.b16 %v1527
        %v1608 = vunpack.c.l.b16 %v1528
        %v1609 = vunpack.c.l.b16 %v1529
        %v1610 = vunpack.c.l.b16 %v1530
        %v1611 = vunpack.c.l.b16 %v1531
        %v1612 = vunpack.c.h.b16 %v1528
        %v1613 = vunpack.c.h.b16 %v1529
        %v1614 = vunpack.c.h.b16 %v1530
        %v1615 = vunpack.c.h.b16 %v1531
        %v1616 = vunpack.c.l.b16 %v1532
        %v1617 = vunpack.c.l.b16 %v1533
        %v1618 = vunpack.c.l.b16 %v1534
        %v1619 = vunpack.c.l.b16 %v1535
        %v1620 = vunpack.c.h.b16 %v1532
        %v1621 = vunpack.c.h.b16 %v1533
        %v1622 = vunpack.c.h.b16 %v1534
        %v1623 = vunpack.c.h.b16 %v1535
        %v1624 = vunpack.c.l.b16 %v1536
        %v1625 = vunpack.c.l.b16 %v1537
        %v1626 = vunpack.c.l.b16 %v1538
        %v1627 = vunpack.c.l.b16 %v1539
        %v1628 = vunpack.c.h.b16 %v1536
        %v1629 = vunpack.c.h.b16 %v1537
        %v1630 = vunpack.c.h.b16 %v1538
        %v1631 = vunpack.c.h.b16 %v1539
        %v1632 = vunpack.c.l.b16 %v1540
        %v1633 = vunpack.c.l.b16 %v1541
        %v1634 = vunpack.c.l.b16 %v1542
        %v1635 = vunpack.c.l.b16 %v1543
        %v1636 = vunpack.c.h.b16 %v1540
        %v1637 = vunpack.c.h.b16 %v1541
        %v1638 = vunpack.c.h.b16 %v1542
        %v1639 = vunpack.c.h.b16 %v1543
        %v1640 = vpack.c.b16 %v1577, %v1576
        %v1641 = vpack.c.b16 %v1579, %v1578
        %v1642 = vpack.c.b16 %v1581, %v1580
        %v1643 = vpack.c.b16 %v1583, %v1582
        %v1644 = vpack.c.b16 %v1585, %v1584
        %v1645 = vpack.c.b16 %v1587, %v1586
        %v1646 = vpack.c.b16 %v1589, %v1588
        %v1647 = vpack.c.b16 %v1591, %v1590
        %v1648 = vpack.c.b16 %v1593, %v1592
        %v1649 = vpack.c.b16 %v1595, %v1594
        %v1650 = vpack.c.b16 %v1597, %v1596
        %v1651 = vpack.c.b16 %v1599, %v1598
        %v1652 = vpack.c.b16 %v1601, %v1600
        %v1653 = vpack.c.b16 %v1603, %v1602
        %v1654 = vpack.c.b16 %v1605, %v1604
        %v1655 = vpack.c.b16 %v1607, %v1606
        %v1656 = vpack.c.b16 %v1609, %v1608
        %v1657 = vpack.c.b16 %v1611, %v1610
        %v1658 = vpack.c.b16 %v1613, %v1612
        %v1659 = vpack.c.b16 %v1615, %v1614
        %v1660 = vpack.c.b16 %v1617, %v1616
        %v1661 = vpack.c.b16 %v1619, %v1618
        %v1662 = vpack.c.b16 %v1621, %v1620
        %v1663 = vpack.c.b16 %v1623, %v1622
        %v1664 = vpack.c.b16 %v1625, %v1624
        %v1665 = vpack.c.b16 %v1627, %v1626
        %v1666 = vpack.c.b16 %v1629, %v1628
        %v1667 = vpack.c.b16 %v1631, %v1630
        %v1668 = vpack.c.b16 %v1633, %v1632
        %v1669 = vpack.c.b16 %v1635, %v1634
        %v1670 = vpack.c.b16 %v1637, %v1636
        %v1671 = vpack.c.b16 %v1639, %v1638
        %1704 = vst [vmem:[%s237] sm:$0xff] %v1640
        %1705 = vst [vmem:[%s237 + $0x8] sm:$0xff] %v1641
        %1706 = vst [vmem:[%s237 + $0x10] sm:$0xff] %v1642
        %1707 = vst [vmem:[%s237 + $0x18] sm:$0xff] %v1643
        %1708 = vst [vmem:[%s237 + $0x20] sm:$0xff] %v1644
        %1709 = vst [vmem:[%s237 + $0x28] sm:$0xff] %v1645
        %1710 = vst [vmem:[%s237 + $0x30] sm:$0xff] %v1646
        %1711 = vst [vmem:[%s237 + $0x38] sm:$0xff] %v1647
        %1712 = vst [vmem:[%s237 + $0x40] sm:$0xff] %v1648
        %1713 = vst [vmem:[%s237 + $0x48] sm:$0xff] %v1649
        %1714 = vst [vmem:[%s237 + $0x50] sm:$0xff] %v1650
        %1715 = vst [vmem:[%s237 + $0x58] sm:$0xff] %v1651
        %1716 = vst [vmem:[%s237 + $0x60] sm:$0xff] %v1652
        %1717 = vst [vmem:[%s237 + $0x68] sm:$0xff] %v1653
        %1718 = vst [vmem:[%s237 + $0x70] sm:$0xff] %v1654
        %1719 = vst [vmem:[%s237 + $0x78] sm:$0xff] %v1655
        %1720 = vst [vmem:[%s237 + $0x80] sm:$0xff] %v1656
        %1721 = vst [vmem:[%s237 + $0x88] sm:$0xff] %v1657
        %1722 = vst [vmem:[%s237 + $0x90] sm:$0xff] %v1658
        %1723 = vst [vmem:[%s237 + $0x98] sm:$0xff] %v1659
        %1724 = vst [vmem:[%s237 + $0xa0] sm:$0xff] %v1660
        %1725 = vst [vmem:[%s237 + $0xa8] sm:$0xff] %v1661
        %1726 = vst [vmem:[%s237 + $0xb0] sm:$0xff] %v1662
        %1727 = vst [vmem:[%s237 + $0xb8] sm:$0xff] %v1663
        %1728 = vst [vmem:[%s237 + $0xc0] sm:$0xff] %v1664
        %1729 = vst [vmem:[%s237 + $0xc8] sm:$0xff] %v1665
        %1730 = vst [vmem:[%s237 + $0xd0] sm:$0xff] %v1666
        %1731 = vst [vmem:[%s237 + $0xd8] sm:$0xff] %v1667
        %1732 = vst [vmem:[%s237 + $0xe0] sm:$0xff] %v1668
        %1733 = vst [vmem:[%s237 + $0xe8] sm:$0xff] %v1669
        %1734 = vst [vmem:[%s237 + $0xf0] sm:$0xff] %v1670
        %1735 = vst [vmem:[%s237 + $0xf8] sm:$0xff] %v1671
        %s1736 = sand.u32 %s93, 1
        %s1737 = scalar_lea.sflag [#allocation3], %s1736
        %s1738 = sand.u32 %s93, 1
        %s1739 = smul.addr %s1738, 256
        %s1740 = scalar_lea.vmem [#allocation2], %s1739
        %s1741 = sand.u32 %s22, 1
        %s1742 = scalar_lea.sflag [#allocation5], %s1741
        %s1743 = sand.u32 %s121, 1
        %s1744 = smul.addr %s1743, 256
        %s1745 = scalar_lea.vmem [#allocation4], %s1744
        %s1746 = sand.u32 %s22, 1
        %s1747 = scalar_lea.sflag [#allocation5], %s1746
        %s1748 = sand.u32 %s149, 1
        %s1749 = smul.addr %s1748, 256
        %s1750 = scalar_lea.vmem [#allocation6], %s1749
        // Predicated region
        $region29: #{tpu_custom_call.1} parent=27 // pred_check
          %p1751 = pneg %p103
        $region30: #{tpu_custom_call.1} parent=27 // pred_check_branch
          %1753 = sbr.rel (%p1751) target = $region32
        $region31: #{tpu_custom_call.1} parent=27 // pred_region
          %s1754 = smul.u32 4, %s27
          %s1756 = ssub.s32 4096, 4096
          %1757 = vsyncadd %s1737, %s1756
          %s1758 = smul.addr %s26, 64
          %s1759 = sadd.s32 %s1754, %s1758
          %s1760 = smul.addr %s1759, 64
          %s1761 = scalar_lea.hbm %s2, %s1760
          %s1762 = sshll.u32 %s1740, 4
          %s1763 = int_to_ptr.vmem [resolvable:$true] %s1762
          %1768 = dma.vmem_to_hbm [thread:$0]  %s1763, 4096, %s1761, %s1737, 256, 256, 16
        $region32: #{tpu_custom_call.1} parent=27 // pred_fallthru
          _
        // Predicated region
        $region33: #{tpu_custom_call.1} parent=27 // pred_check
          %p1769 = pneg %p131
        $region34: #{tpu_custom_call.1} parent=27 // pred_check_branch
          %1771 = sbr.rel (%p1769) target = $region36
        $region35: #{tpu_custom_call.1} parent=27 // pred_region
          %s1772 = smul.u32 4, %s27
          %s1774 = ssub.s32 4096, 4096
          %1775 = vsyncadd %s1742, %s1774
          %s1776 = smul.addr %s26, 64
          %s1777 = sadd.s32 %s1772, %s1776
          %s1778 = smul.addr %s1777, 64
          %s1779 = scalar_lea.hbm %s3, %s1778
          %s1780 = sshll.u32 %s1745, 4
          %s1781 = int_to_ptr.vmem [resolvable:$true] %s1780
          %1786 = dma.vmem_to_hbm [thread:$0]  %s1781, 4096, %s1779, %s1742, 256, 256, 16
        $region36: #{tpu_custom_call.1} parent=27 // pred_fallthru
          _
        // Predicated region
        $region37: #{tpu_custom_call.1} parent=27 // pred_check
          %p1787 = pneg %p159
        $region38: #{tpu_custom_call.1} parent=27 // pred_check_branch
          %1789 = sbr.rel (%p1787) target = $region40
        $region39: #{tpu_custom_call.1} parent=27 // pred_region
          %s1790 = smul.u32 4, %s27
          %s1792 = ssub.s32 4096, 4096
          %1793 = vsyncadd %s1747, %s1792
          %s1794 = smul.addr %s26, 64
          %s1795 = sadd.s32 %s1790, %s1794
          %s1796 = smul.addr %s1795, 64
          %s1797 = scalar_lea.hbm %s4, %s1796
          %s1798 = sshll.u32 %s1750, 4
          %s1799 = int_to_ptr.vmem [resolvable:$true] %s1798
          %1804 = dma.vmem_to_hbm [thread:$0]  %s1799, 4096, %s1797, %s1747, 256, 256, 16
        $region40: #{tpu_custom_call.1} parent=27 // pred_fallthru
          _
      $region28: #{tpu_custom_call.1} parent=5 // pred_fallthru
        _
      %p1805 = scmp.le.s32.totalorder 2, %s17
      // Predicated region
      $region41: #{tpu_custom_call.1} parent=5 // pred_check
        %p1806 = pneg %p1805
      $region42: #{tpu_custom_call.1} parent=5 // pred_check_branch
        %1808 = sbr.rel (%p1806) target = $region44
      $region43: #{tpu_custom_call.1} parent=5 // pred_region
        %s1809 = ssub.s32 %s17, 2
        // Predicated region
        $region45: #{tpu_custom_call.1} parent=43 // pred_check
          %p1810 = pneg %p109
        $region46: #{tpu_custom_call.1} parent=43 // pred_check_branch
          %1812 = sbr.rel (%p1810) target = $region48
        $region47: #{tpu_custom_call.1} parent=43 // pred_region
          %s1813 = sand.u32 %s94, 1
          %s1814 = scalar_lea.sflag [#allocation3], %s1813
          %s1815 = sand.u32 %s94, 1
          %s1816 = smul.addr %s1815, 256
          %s1817 = scalar_lea.vmem [#allocation2], %s1816
          %1818 = dma.done %s1814, 4096
        $region48: #{tpu_custom_call.1} parent=43 // pred_fallthru
          _
        // Predicated region
        $region49: #{tpu_custom_call.1} parent=43 // pred_check
          %p1819 = pneg %p137
        $region50: #{tpu_custom_call.1} parent=43 // pred_check_branch
          %1821 = sbr.rel (%p1819) target = $region52
        $region51: #{tpu_custom_call.1} parent=43 // pred_region
          %s1822 = sand.u32 %s23, 1
          %s1823 = scalar_lea.sflag [#allocation5], %s1822
          %s1824 = sand.u32 %s122, 1
          %s1825 = smul.addr %s1824, 256
          %s1826 = scalar_lea.vmem [#allocation4], %s1825
          %1827 = dma.done %s1823, 4096
        $region52: #{tpu_custom_call.1} parent=43 // pred_fallthru
          _
        // Predicated region
        $region53: #{tpu_custom_call.1} parent=43 // pred_check
          %p1828 = pneg %p165
        $region54: #{tpu_custom_call.1} parent=43 // pred_check_branch
          %1830 = sbr.rel (%p1828) target = $region56
        $region55: #{tpu_custom_call.1} parent=43 // pred_region
          %s1831 = sand.u32 %s23, 1
          %s1832 = scalar_lea.sflag [#allocation5], %s1831
          %s1833 = sand.u32 %s150, 1
          %s1834 = smul.addr %s1833, 256
          %s1835 = scalar_lea.vmem [#allocation6], %s1834
          %1836 = dma.done %s1832, 4096
        $region56: #{tpu_custom_call.1} parent=43 // pred_fallthru
          _
      $region44: #{tpu_custom_call.1} parent=5 // pred_fallthru
        _
    $region6: #{tpu_custom_call.1} parent=1 // loop_footer
      %s21 = sadd.s32 1, %s17
    $region7: #{tpu_custom_call.1} parent=1 // loop_footer_branch
      %16 = sbr.rel target = $region3
    $region8: #{tpu_custom_call.1} parent=1 // loop_exit
      _
    %1837 = vsyncpa [#allocation3], 1
    %s1838 = scalar_lea.sflag [#allocation3], 1
    %1839 = vsyncpa %s1838, 1
    %1840 = vsyncpa [#allocation5], 1
    %s1841 = scalar_lea.sflag [#allocation5], 1
    %1842 = vsyncpa %s1841, 1

</llo_original>
